<compile_context>
chip_gen: v6e
topology: v6e:2x2x1
jax: 0.10.0
libtpu: 0.0.40
codegen_flags: <defaults>
</compile_context>

<pallas_src>
import functools
import math

import jax
import jax.numpy as jnp
from jax import lax
from jax.experimental import pallas as pl
from jax.experimental.pallas import tpu as pltpu


def _collab_attn_kernel(
    x_ref,       # (S, Din)            per-sequence activation block
    wqkv_ref,    # (Din, 2*Dk + Dv)    packed [Wq^T | Wk^T | Wv^T]
    wd3_ref,     # (H, dh, Dout)       dense weight split per head
    small_ref,   # (2*H + 4, Dmax)     [mixing*s | Wcb*s | bv | bd | ln_w | ln_b] zero-padded
    o_ref,       # (S, Dout)
    *,
    seq: int,
    num_heads: int,
    dim_in: int,
    dim_k: int,
    dim_v: int,
    dim_out: int,
    ln_eps: float,
):
    S, H = seq, num_heads
    Din, Dk, Dv, Dout = dim_in, dim_k, dim_v, dim_out
    dh = Dv // H
    f32 = jnp.float32

    x = x_ref[...]                                            # (S, Din)

    mix = small_ref[0:H, 0:Dk]                                # (H, Dk)   1/sqrt(dh) folded
    wcb = small_ref[H:2 * H, 0:Din]                           # (H, Din)  1/sqrt(dh) folded
    bv = small_ref[2 * H + 0:2 * H + 1, 0:Dv]                 # (1, Dv)
    bd = small_ref[2 * H + 1:2 * H + 2, 0:Dout]               # (1, Dout)
    lnw = small_ref[2 * H + 2:2 * H + 3, 0:Dout]              # (1, Dout)
    lnb = small_ref[2 * H + 3:2 * H + 4, 0:Dout]              # (1, Dout)

    # ---- fused Q/K/V projection: one matmul against the resident packed weight ----
    proj = jnp.dot(x, wqkv_ref[...], preferred_element_type=f32)       # (S, 2Dk+Dv)
    q = proj[:, 0:Dk]
    k = proj[:, Dk:2 * Dk]
    v = proj[:, 2 * Dk:2 * Dk + Dv] + bv                               # (S, Dv)

    # content bias produced directly transposed: cbT[h, key_pos] (no in-kernel transpose)
    cbT = lax.dot_general(wcb, x, (((1,), (1,)), ((), ())),
                          preferred_element_type=f32)                  # (H, S)

    # ---- scores with heads stacked on the sublane axis ----
    qmix = (mix[:, None, :] * q[None, :, :]).reshape(H * S, Dk)        # (H*S, Dk)
    scores = lax.dot_general(qmix, k, (((1,), (1,)), ((), ())),
                             preferred_element_type=f32)               # (H*S, S)
    scores = scores.reshape(H, S, S) + cbT[:, None, :]                 # (H, S_q, S_k)

    # per-head softmax over the key (lane) axis; exact normalization (EUP/VPU has slack)
    m = jnp.max(scores, axis=-1, keepdims=True)
    e = jnp.exp(scores - m)
    p = e / jnp.sum(e, axis=-1, keepdims=True)                         # (H, S, S)

    # ---- context + dense: per-head batched contractions (exact FLOPs, no block-diag) ----
    v3 = jnp.stack([v[:, h * dh:(h + 1) * dh] for h in range(H)], axis=0)   # (H, S, dh)
    ctx3 = jnp.einsum('hqk,hkd->hqd', p, v3, preferred_element_type=f32)    # (H, S, dh)
    out_h = jnp.einsum('hqd,hdo->hqo', ctx3, wd3_ref[...],
                       preferred_element_type=f32)                          # (H, S, Dout)
    out = jnp.sum(out_h, axis=0) + bd                                       # (S, Dout)

    # ---- residual + LayerNorm ----
    y = x + out                                      # requires Din == Dout (asserted in prep)
    mean = jnp.mean(y, axis=-1, keepdims=True)
    var = jnp.mean((y - mean) ** 2, axis=-1, keepdims=True)
    o_ref[...] = (y - mean) * lax.rsqrt(var + ln_eps) * lnw + lnb


def prepare_params(params, *, num_heads, dim_key_query_all):
    """One-time parameter preprocessing:
    - transpose Linear weights and pack [Wq^T | Wk^T | Wv^T] into one weight slab
    - split the dense weight per head (H, dh, Dout) so the kernel never re-merges heads
    - fold 1/sqrt(attention_head_size) into mixing and content-bias weights
    - pack all small params into one zero-padded (2H+4, Dmax) slab (single DMA)."""
    H = num_heads
    scale = 1.0 / math.sqrt(dim_key_query_all / num_heads)

    wq_t = params["wq"].T            # (Din, Dk)
    wk_t = params["wk"].T            # (Din, Dk)
    wv_t = params["wv"].T            # (Din, Dv)
    wd_t = params["wd"].T            # (Dv, Dout)

    Din, Dk = wq_t.shape
    Dv = wv_t.shape[1]
    Dout = wd_t.shape[1]
    assert Dv % H == 0, "dim_value_all must be divisible by num_heads"
    dh = Dv // H

    # The module's residual + LayerNorm after the dense layer implicitly requires these
    # to line up; fail loudly instead of silently producing wrong shapes/values.
    assert Din == Dout, "residual x + dense(ctx) requires dim_input == dim_output"
    assert params["ln_w"].shape == (1, Dout) and params["ln_b"].shape == (1, Dout)
    assert params["bd"].shape == (1, Dout) and params["bv"].shape == (1, Dv)
    assert params["mixing"].shape == (H, Dk) and params["wcb"].shape == (H, Din)

    w_qkv = jnp.concatenate([wq_t, wk_t, wv_t], axis=1)      # (Din, 2*Dk + Dv)
    wd3 = wd_t.reshape(H, dh, Dout)                          # per-head dense slabs

    Dmax = max(Din, Dk, Dv, Dout)

    def pad_row(a):
        return jnp.pad(a, ((0, 0), (0, Dmax - a.shape[1])))

    small = jnp.concatenate([
        pad_row(params["mixing"] * scale),   # rows [0, H)
        pad_row(params["wcb"] * scale),      # rows [H, 2H)
        pad_row(params["bv"]),               # row 2H
        pad_row(params["bd"]),               # row 2H + 1
        pad_row(params["ln_w"]),             # row 2H + 2
        pad_row(params["ln_b"]),             # row 2H + 3
    ], axis=0)                               # (2H+4, Dmax)

    return {
        "w_qkv": w_qkv,
        "wd3": wd3,
        "small": small,
        "dims": {"Din": Din, "Dk": Dk, "Dv": Dv, "Dout": Dout},
    }


def collaborative_attention(x, kparams, *, num_heads):
    """x: (B, S, dim_input) f32. kparams: output of prepare_params. Returns (B, S, dim_output)."""
    B, S, Din = x.shape
    d = kparams["dims"]
    assert Din == d["Din"]
    H, Dk, Dv, Dout = num_heads, d["Dk"], d["Dv"], d["Dout"]

    x2d = x.reshape(B * S, Din)  # flatten outside the kernel (free layout-wise)

    kernel = functools.partial(
        _collab_attn_kernel,
        seq=S, num_heads=H, dim_in=Din, dim_k=Dk, dim_v=Dv, dim_out=Dout,
        ln_eps=1e-5)

    def resident(a):
        # constant block index -> weight stays VMEM-resident across grid steps
        nd = a.ndim
        return pl.BlockSpec(a.shape, lambda b: (0,) * nd)

    out2d = pl.pallas_call(
        kernel,
        out_shape=jax.ShapeDtypeStruct((B * S, Dout), jnp.float32),
        grid=(B,),  # one sequence per step; "parallel" -> shards across v7x's 2 TCs
        in_specs=[
            pl.BlockSpec((S, Din), lambda b: (b, 0)),   # activation block
            resident(kparams["w_qkv"]),
            resident(kparams["wd3"]),
            resident(kparams["small"]),
        ],
        out_specs=pl.BlockSpec((S, Dout), lambda b: (b, 0)),
        compiler_params=pltpu.CompilerParams(
            dimension_semantics=("parallel",)),
    )(x2d, kparams["w_qkv"], kparams["wd3"], kparams["small"])

    return out2d.reshape(B, S, Dout)


def _reference(x, params, num_heads):
    """Pure-JAX reference mirroring the PyTorch forward, for validation."""
    B, S, Din = x.shape
    Dk = params["wq"].shape[0]
    Dv = params["wv"].shape[0]
    H = num_heads
    dh = Dv // H
    q = x @ params["wq"].T
    k = x @ params["wk"].T
    cb = x @ params["wcb"].T
    v = x @ params["wv"].T + params["bv"][0]
    mixed_q = q[:, None, :, :] * params["mixing"][None, :, None, :]
    scores = jnp.einsum("bhqd,bkd->bhqk", mixed_q, k)
    scores = scores + jnp.transpose(cb, (0, 2, 1))[:, :, None, :]
    scores = scores / math.sqrt(Dk / H)
    probs = jax.nn.softmax(scores, axis=-1)
    v4 = v.reshape(B, S, H, dh).transpose(0, 2, 1, 3)
    ctx = jnp.einsum("bhqk,bhkd->bhqd", probs, v4)
    ctx = ctx.transpose(0, 2, 1, 3).reshape(B, S, Dv)
    out = ctx @ params["wd"].T + params["bd"][0]
    y = x + out
    mean = jnp.mean(y, axis=-1, keepdims=True)
    var = jnp.mean((y - mean) ** 2, axis=-1, keepdims=True)
    return (y - mean) / jnp.sqrt(var + 1e-5) * params["ln_w"][0] + params["ln_b"][0]


if __name__ == "__main__":
    B, S = 2, 8
    Din = Dk = Dv = Dout = 32
    H = 4

    key = jax.random.PRNGKey(0)
    ks = jax.random.split(key, 12)

    def linear_w(k_, out_f, in_f):
        bound = 1.0 / math.sqrt(in_f)
        return jax.random.uniform(k_, (out_f, in_f), jnp.float32, -bound, bound)

    params = {
        "wq": linear_w(ks[0], Dk, Din),
        "wk": linear_w(ks[1], Dk, Din),
        "wcb": linear_w(ks[2], H, Din),
        "wv": linear_w(ks[3], Dv, Din),
        "bv": jax.random.uniform(ks[4], (1, Dv), jnp.float32, -1.0 / math.sqrt(Din), 1.0 / math.sqrt(Din)),
        "mixing": 0.2 * jax.random.normal(ks[5], (H, Dk), jnp.float32),   # MixingMatrixInit.UNIFORM
        "wd": linear_w(ks[6], Dout, Dv),
        "bd": jax.random.uniform(ks[7], (1, Dout), jnp.float32, -1.0 / math.sqrt(Dv), 1.0 / math.sqrt(Dv)),
        "ln_w": 1.0 + 0.1 * jax.random.normal(ks[8], (1, Dout), jnp.float32),
        "ln_b": 0.1 * jax.random.normal(ks[9], (1, Dout), jnp.float32),
    }

    x = jax.random.normal(ks[10], (B, S, Din), jnp.float32)

    kparams = prepare_params(params, num_heads=H, dim_key_query_all=Dk)
    out = collaborative_attention(x, kparams, num_heads=H)
    out = jax.block_until_ready(out)

    ref = _reference(x, params, H)
    assert out.shape == (B, S, Dout)
    # The approx reciprocal is gone (exact softmax normalization); the remaining margin
    # covers the MXU's default (bf16-pass) f32 matmul precision, which both paths use but
    # with different contraction groupings.
    assert jnp.allclose(out, ref, atol=2e-3, rtol=2e-3), "mismatch vs reference"

    # TODO(synk): attention_mask / head_mask inputs and training-mode dropout are not
    # implemented (module exercised with defaults: None masks, eval-mode dropout p=0).
    print("KERNEL_OK")
</pallas_src>

<mosaic_0001>
module attributes {stable_mosaic.version = 11 : i64} {
  func.func @_collab_attn_kernel(%arg0: i32, %arg1: memref<8x32xf32, #tpu.memory_space<vmem>>, %arg2: memref<32x96xf32, #tpu.memory_space<vmem>>, %arg3: memref<4x8x32xf32, #tpu.memory_space<vmem>>, %arg4: memref<12x32xf32, #tpu.memory_space<vmem>>, %arg5: memref<8x32xf32, #tpu.memory_space<vmem>>) attributes {dimension_semantics = [#tpu.dimension_semantics<parallel>], iteration_bounds = array<i64: 2>, scalar_prefetch = 0 : i64, scratch_operands = 0 : i64, tpu.core_type = #tpu.core_type<tc>, window_params = [{transform_indices = @transform_0, window_bounds = array<i64: 8, 32>}, {pipeline_mode = #tpu.pipeline_mode<synchronous>, transform_indices = @transform_1, window_bounds = array<i64: 32, 96>}, {pipeline_mode = #tpu.pipeline_mode<synchronous>, transform_indices = @transform_2, window_bounds = array<i64: 4, 8, 32>}, {pipeline_mode = #tpu.pipeline_mode<synchronous>, transform_indices = @transform_3, window_bounds = array<i64: 12, 32>}, {transform_indices = @transform_4, window_bounds = array<i64: 8, 32>}]} {
    %c0 = arith.constant 0 : index
    %c0_0 = arith.constant 0 : index
    %0 = vector.load %arg1[%c0, %c0_0] : memref<8x32xf32, #tpu.memory_space<vmem>>, vector<8x32xf32>
    %c0_1 = arith.constant 0 : index
    %c0_2 = arith.constant 0 : index
    %1 = vector.load %arg4[%c0_1, %c0_2] : memref<12x32xf32, #tpu.memory_space<vmem>>, vector<4x32xf32>
    %c4 = arith.constant 4 : index
    %c0_3 = arith.constant 0 : index
    %2 = vector.load %arg4[%c4, %c0_3] : memref<12x32xf32, #tpu.memory_space<vmem>>, vector<4x32xf32>
    %c8 = arith.constant 8 : index
    %c0_4 = arith.constant 0 : index
    %3 = vector.load %arg4[%c8, %c0_4] : memref<12x32xf32, #tpu.memory_space<vmem>>, vector<1x32xf32>
    %c9 = arith.constant 9 : index
    %c0_5 = arith.constant 0 : index
    %4 = vector.load %arg4[%c9, %c0_5] : memref<12x32xf32, #tpu.memory_space<vmem>>, vector<1x32xf32>
    %c10 = arith.constant 10 : index
    %c0_6 = arith.constant 0 : index
    %5 = vector.load %arg4[%c10, %c0_6] : memref<12x32xf32, #tpu.memory_space<vmem>>, vector<1x32xf32>
    %c11 = arith.constant 11 : index
    %c0_7 = arith.constant 0 : index
    %6 = vector.load %arg4[%c11, %c0_7] : memref<12x32xf32, #tpu.memory_space<vmem>>, vector<1x32xf32>
    %c0_8 = arith.constant 0 : index
    %c0_9 = arith.constant 0 : index
    %7 = vector.load %arg2[%c0_8, %c0_9] : memref<32x96xf32, #tpu.memory_space<vmem>>, vector<32x96xf32>
    %cst = arith.constant dense<0.000000e+00> : vector<8x96xf32>
    %8 = tpu.matmul %0, %7, %cst {dimension_numbers = #tpu.dot_dimension_numbers<[1], [0], [0], [1], [0, 0, 1, 1], [], []>} : vector<8x32xf32>, vector<32x96xf32>, vector<8x96xf32> -> vector<8x96xf32>
    %9 = vector.extract_strided_slice %8 {offsets = [0, 0], sizes = [8, 32], strides = [1, 1]} : vector<8x96xf32> to vector<8x32xf32>
    %10 = vector.extract_strided_slice %8 {offsets = [0, 32], sizes = [8, 32], strides = [1, 1]} : vector<8x96xf32> to vector<8x32xf32>
    %11 = vector.extract_strided_slice %8 {offsets = [0, 64], sizes = [8, 32], strides = [1, 1]} : vector<8x96xf32> to vector<8x32xf32>
    %12 = vector.broadcast %3 : vector<1x32xf32> to vector<8x32xf32>
    %13 = arith.addf %11, %12 : vector<8x32xf32>
    %cst_10 = arith.constant dense<0.000000e+00> : vector<4x8xf32>
    %14 = tpu.matmul %2, %0, %cst_10 {dimension_numbers = #tpu.dot_dimension_numbers<[1], [1], [0], [0], [0, 0, 1, 0], [], []>} : vector<4x32xf32>, vector<8x32xf32>, vector<4x8xf32> -> vector<4x8xf32>
    %15 = vector.shape_cast %1 : vector<4x32xf32> to vector<4x1x32xf32>
    %16 = vector.shape_cast %9 : vector<8x32xf32> to vector<1x8x32xf32>
    %17 = vector.broadcast %15 : vector<4x1x32xf32> to vector<4x8x32xf32>
    %18 = vector.broadcast %16 : vector<1x8x32xf32> to vector<4x8x32xf32>
    %19 = arith.mulf %17, %18 : vector<4x8x32xf32>
    %20 = vector.shape_cast %19 : vector<4x8x32xf32> to vector<32x32xf32>
    %cst_11 = arith.constant dense<0.000000e+00> : vector<32x8xf32>
    %21 = tpu.matmul %20, %10, %cst_11 {dimension_numbers = #tpu.dot_dimension_numbers<[1], [1], [0], [0], [0, 0, 1, 0], [], []>} : vector<32x32xf32>, vector<8x32xf32>, vector<32x8xf32> -> vector<32x8xf32>
    %22 = vector.shape_cast %21 : vector<32x8xf32> to vector<4x8x8xf32>
    %23 = vector.shape_cast %14 : vector<4x8xf32> to vector<4x1x8xf32>
    %24 = vector.broadcast %23 : vector<4x1x8xf32> to vector<4x8x8xf32>
    %25 = arith.addf %22, %24 : vector<4x8x8xf32>
    %cst_12 = arith.constant dense<0xFF800000> : vector<4x8xf32>
    %26 = vector.multi_reduction <maximumf>, %25, %cst_12 [2] : vector<4x8x8xf32> to vector<4x8xf32>
    %27 = vector.shape_cast %26 : vector<4x8xf32> to vector<4x8x1xf32>
    %28 = vector.broadcast %27 : vector<4x8x1xf32> to vector<4x8x8xf32>
    %29 = arith.subf %25, %28 : vector<4x8x8xf32>
    %30 = math.exp %29 : vector<4x8x8xf32>
    %cst_13 = arith.constant dense<0.000000e+00> : vector<4x8xf32>
    %31 = vector.multi_reduction <add>, %30, %cst_13 [2] : vector<4x8x8xf32> to vector<4x8xf32>
    %32 = vector.shape_cast %31 : vector<4x8xf32> to vector<4x8x1xf32>
    %33 = vector.broadcast %32 : vector<4x8x1xf32> to vector<4x8x8xf32>
    %34 = arith.divf %30, %33 : vector<4x8x8xf32>
    %35 = vector.extract_strided_slice %13 {offsets = [0, 0], sizes = [8, 8], strides = [1, 1]} : vector<8x32xf32> to vector<8x8xf32>
    %36 = vector.extract_strided_slice %13 {offsets = [0, 8], sizes = [8, 8], strides = [1, 1]} : vector<8x32xf32> to vector<8x8xf32>
    %37 = vector.extract_strided_slice %13 {offsets = [0, 16], sizes = [8, 8], strides = [1, 1]} : vector<8x32xf32> to vector<8x8xf32>
    %38 = vector.extract_strided_slice %13 {offsets = [0, 24], sizes = [8, 8], strides = [1, 1]} : vector<8x32xf32> to vector<8x8xf32>
    %39 = vector.shape_cast %35 : vector<8x8xf32> to vector<1x8x8xf32>
    %40 = vector.shape_cast %36 : vector<8x8xf32> to vector<1x8x8xf32>
    %41 = vector.shape_cast %37 : vector<8x8xf32> to vector<1x8x8xf32>
    %42 = vector.shape_cast %38 : vector<8x8xf32> to vector<1x8x8xf32>
    %43 = tpu.concatenate %39, %40, %41, %42 in 0 : vector<1x8x8xf32>, vector<1x8x8xf32>, vector<1x8x8xf32>, vector<1x8x8xf32> -> vector<4x8x8xf32>
    "tpu.trace_start"() <{level = 10 : i32, message = "hqk,hkd->hqd"}> : () -> ()
    %cst_14 = arith.constant dense<0.000000e+00> : vector<4x8x8xf32>
    %44 = tpu.matmul %34, %43, %cst_14 {dimension_numbers = #tpu.dot_dimension_numbers<[2], [1], [1], [2], [0, 0, 0, 1, 1, 2], [0], [0]>} : vector<4x8x8xf32>, vector<4x8x8xf32>, vector<4x8x8xf32> -> vector<4x8x8xf32>
    "tpu.trace_stop"() : () -> ()
    %c0_15 = arith.constant 0 : index
    %c0_16 = arith.constant 0 : index
    %c0_17 = arith.constant 0 : index
    %45 = vector.load %arg3[%c0_15, %c0_16, %c0_17] : memref<4x8x32xf32, #tpu.memory_space<vmem>>, vector<4x8x32xf32>
    "tpu.trace_start"() <{level = 10 : i32, message = "hqd,hdo->hqo"}> : () -> ()
    %cst_18 = arith.constant dense<0.000000e+00> : vector<4x8x32xf32>
    %46 = tpu.matmul %44, %45, %cst_18 {dimension_numbers = #tpu.dot_dimension_numbers<[2], [1], [1], [2], [0, 0, 0, 1, 1, 2], [0], [0]>} : vector<4x8x8xf32>, vector<4x8x32xf32>, vector<4x8x32xf32> -> vector<4x8x32xf32>
    "tpu.trace_stop"() : () -> ()
    %cst_19 = arith.constant dense<0.000000e+00> : vector<8x32xf32>
    %47 = vector.multi_reduction <add>, %46, %cst_19 [0] : vector<4x8x32xf32> to vector<8x32xf32>
    %48 = vector.broadcast %4 : vector<1x32xf32> to vector<8x32xf32>
    %49 = arith.addf %47, %48 : vector<8x32xf32>
    %50 = arith.addf %0, %49 : vector<8x32xf32>
    %cst_20 = arith.constant dense<0.000000e+00> : vector<8xf32>
    %51 = vector.multi_reduction <add>, %50, %cst_20 [1] : vector<8x32xf32> to vector<8xf32>
    %52 = vector.shape_cast %51 : vector<8xf32> to vector<8x1xf32>
    %cst_21 = arith.constant 3.200000e+01 : f32
    %53 = vector.broadcast %cst_21 : f32 to vector<8x1xf32>
    %54 = arith.divf %52, %53 : vector<8x1xf32>
    %55 = vector.broadcast %54 : vector<8x1xf32> to vector<8x32xf32>
    %56 = arith.subf %50, %55 : vector<8x32xf32>
    %57 = arith.mulf %56, %56 : vector<8x32xf32>
    %cst_22 = arith.constant dense<0.000000e+00> : vector<8xf32>
    %58 = vector.multi_reduction <add>, %57, %cst_22 [1] : vector<8x32xf32> to vector<8xf32>
    %59 = vector.shape_cast %58 : vector<8xf32> to vector<8x1xf32>
    %cst_23 = arith.constant 3.200000e+01 : f32
    %60 = vector.broadcast %cst_23 : f32 to vector<8x1xf32>
    %61 = arith.divf %59, %60 : vector<8x1xf32>
    %62 = vector.broadcast %54 : vector<8x1xf32> to vector<8x32xf32>
    %63 = arith.subf %50, %62 : vector<8x32xf32>
    %cst_24 = arith.constant 9.99999974E-6 : f32
    %64 = vector.broadcast %cst_24 : f32 to vector<8x1xf32>
    %65 = arith.addf %61, %64 : vector<8x1xf32>
    %66 = math.rsqrt %65 : vector<8x1xf32>
    %67 = vector.broadcast %66 : vector<8x1xf32> to vector<8x32xf32>
    %68 = arith.mulf %63, %67 : vector<8x32xf32>
    %69 = vector.broadcast %5 : vector<1x32xf32> to vector<8x32xf32>
    %70 = arith.mulf %68, %69 : vector<8x32xf32>
    %71 = vector.broadcast %6 : vector<1x32xf32> to vector<8x32xf32>
    %72 = arith.addf %70, %71 : vector<8x32xf32>
    %c0_25 = arith.constant 0 : index
    %c0_26 = arith.constant 0 : index
    %73 = vector.load %arg5[%c0_25, %c0_26] : memref<8x32xf32, #tpu.memory_space<vmem>>, vector<8x32xf32>
    tpu.vector_store %arg5[%c0_25, %c0_26], %72 {strides = array<i32>} : memref<8x32xf32, #tpu.memory_space<vmem>>, vector<8x32xf32>,
    return
  }
  func.func @transform_0(%arg0: i32) -> (i32, i32) {
    %c0_i32 = arith.constant 0 : i32
    %c0_i32_0 = arith.constant 0 : i32
    return %arg0, %c0_i32 : i32, i32
  }
  func.func @transform_1(%arg0: i32) -> (i32, i32) {
    %c0_i32 = arith.constant 0 : i32
    %c0_i32_0 = arith.constant 0 : i32
    %c0_i32_1 = arith.constant 0 : i32
    return %c0_i32, %c0_i32_0 : i32, i32
  }
  func.func @transform_2(%arg0: i32) -> (i32, i32, i32) {
    %c0_i32 = arith.constant 0 : i32
    %c0_i32_0 = arith.constant 0 : i32
    %c0_i32_1 = arith.constant 0 : i32
    %c0_i32_2 = arith.constant 0 : i32
    return %c0_i32, %c0_i32_0, %c0_i32_1 : i32, i32, i32
  }
  func.func @transform_3(%arg0: i32) -> (i32, i32) {
    %c0_i32 = arith.constant 0 : i32
    %c0_i32_0 = arith.constant 0 : i32
    %c0_i32_1 = arith.constant 0 : i32
    return %c0_i32, %c0_i32_0 : i32, i32
  }
  func.func @transform_4(%arg0: i32) -> (i32, i32) {
    %c0_i32 = arith.constant 0 : i32
    %c0_i32_0 = arith.constant 0 : i32
    return %arg0, %c0_i32 : i32, i32
  }
}

</mosaic_0001>

<llo_original>
// kernel: tpu_custom_call.1
$region0: #{tpu_custom_call.1}
  #allocation0 [shape = 'u32[]', space=smem, size = 0x4, offset = 0x4, fixed_abs, tag = 'smem constant byte address 0x4 - core index']
  #allocation1 [shape = 'u32[144,128]{1,0:T(1,128)}', space=vmem, size = 0x12000, scoped, tag = 'internal scratch']
  %s0 = inlined_call_operand.hbm [shape: f32[16,32], index: 0, kind: input, shape index: {}]
  %s1 = inlined_call_operand.hbm [shape: f32[32,96], index: 1, kind: input, shape index: {}]
  %s2 = inlined_call_operand.hbm [shape: f32[4,8,32], index: 2, kind: input, shape index: {}]
  %s3 = inlined_call_operand.hbm [shape: f32[12,32], index: 3, kind: input, shape index: {}]
  %s4 = inlined_call_operand.hbm [shape: f32[16,32], index: 4, kind: output, shape index: {}]
  %s5 = sld [smem:[#allocation0]]
  $region65: #{tpu_custom_call.1} parent=0
    _
  %s7 = ssub.s32 1, %s5
  %s8 = scalar_select 0, %s7, %s5
  $region1: #{tpu_custom_call.1} parent=0
    #allocation2 [shape = 'u8[8192]{0}', space=vmem, size = 0x2000, scoped, tag = 'input window, operand 0']
    #allocation3 [shape = 's32[2]{0}', space=sflag, size = 0x8, scoped, tag = 'scoped memory for tpu_custom_call.1']
    #allocation4 [shape = 's32[2]{0}', space=sflag, size = 0x8, scoped, tag = 'scoped memory for tpu_custom_call.1']
    #allocation5 [shape = 'u8[16384]{0}', space=vmem, size = 0x4000, scoped, tag = 'input window, operand 1, single buffered']
    #allocation6 [shape = 's32[1]{0}', space=sflag, size = 0x4, scoped, tag = 'scoped memory for tpu_custom_call.1']
    #allocation7 [shape = 'u8[16384]{0}', space=vmem, size = 0x4000, scoped, tag = 'input window, operand 2, single buffered']
    #allocation8 [shape = 'u8[8192]{0}', space=vmem, size = 0x2000, scoped, tag = 'input window, operand 3, single buffered']
    #allocation9 [shape = 's32[1]{0}', space=sflag, size = 0x4, scoped, tag = 'scoped memory for tpu_custom_call.1']
    #allocation10 [shape = 'u8[8192]{0}', space=vmem, size = 0x2000, scoped, tag = 'output window, operand 0']
    %9 = vsyncpa [#allocation3], 0
    %s10 = scalar_lea.sflag [#allocation3], 1
    %11 = vsyncpa %s10, 0
    %12 = vsyncpa [#allocation6], 0
    %13 = vsyncpa [#allocation9], 0
    %14 = vsyncpa [#allocation4], 0
    %s15 = scalar_lea.sflag [#allocation4], 1
    %16 = vsyncpa %s15, 0
    loop: start=0, step=1, limit=4
    $region2: #{tpu_custom_call.1} parent=1 // loop_pre_header
      _
    $region3: #{tpu_custom_call.1} parent=1 // loop_header
      %s18 = sphi 0, %s22
      %p19 = scmp.ge.s32.totalorder %s18, 4
      %s28 = sphi 0, %s30
      %s31 = sphi 0, %s28
      %s32 = sphi 0, %s31
      %s48 = sphi 0, %s32
      %s52 = sphi 0, %s52
      %s54 = sphi 0, %s52
      %s55 = sphi 0, %s54
      %s69 = sphi 0, %s55
      %s73 = sphi 0, %s73
      %s75 = sphi 0, %s73
      %s76 = sphi 0, %s75
      %s90 = sphi 0, %s76
      %s94 = sphi 0, %s94
      %s96 = sphi 0, %s94
      %s97 = sphi 0, %s96
      %s111 = sphi 0, %s97
      %s117 = sphi 0, %s119
      %s120 = sphi 0, %s117
      %s121 = sphi 0, %s120
      %s137 = sphi 0, %s121
    $region4: #{tpu_custom_call.1} parent=1 // loop_header_branch
      %21 = sbr.rel (%p19) target = $region8
    $region5: #{tpu_custom_call.1} parent=1 // loop_body
      %s23 = ssub.s32 %s18, 1
      %s24 = ssub.s32 %s18, 2
      %s25 = sadd.s32 %s18, 1
      %s26 = ssub.s32 %s18, %s25
      %p27 = scmp.eq.s32.totalorder %s26, 0
      %s29 = sadd.s32 %s28, 1
      %s30 = scalar_select %p27, %s28, %s29
      %p33 = pneg %p27
      %p34 = scmp.eq.s32.totalorder %s18, 1
      %p35 = por %p33, %p34
      %p36 = scmp.ne.s32.totalorder %s28, %s31
      %p37 = scmp.eq.s32.totalorder %s18, 0
      %p38 = por %p36, %p37
      %p39 = scmp.ne.s32.totalorder %s28, %s31
      %p40 = scmp.eq.s32.totalorder %s23, 1
      %p41 = por %p39, %p40
      %p42 = scmp.ne.s32.totalorder %s31, %s32
      %p43 = scmp.eq.s32.totalorder %s23, 0
      %p44 = por %p42, %p43
      %p45 = scmp.ne.s32.totalorder %s31, %s32
      %p46 = scmp.eq.s32.totalorder %s24, 1
      %p47 = por %p45, %p46
      %p49 = scmp.ne.s32.totalorder %s32, %s48
      %p50 = scmp.eq.s32.totalorder %s24, 0
      %p51 = por %p49, %p50
      %s53 = sadd.s32 %s52, 1
      %p56 = scmp.eq.s32.totalorder %s18, 1
      %p57 = scmp.ne.s32.totalorder %s52, %s54
      %p58 = scmp.eq.s32.totalorder %s18, 0
      %p59 = por %p57, %p58
      %p60 = scmp.ne.s32.totalorder %s52, %s54
      %p61 = scmp.eq.s32.totalorder %s23, 1
      %p62 = por %p60, %p61
      %p63 = scmp.ne.s32.totalorder %s54, %s55
      %p64 = scmp.eq.s32.totalorder %s23, 0
      %p65 = por %p63, %p64
      %p66 = scmp.ne.s32.totalorder %s54, %s55
      %p67 = scmp.eq.s32.totalorder %s24, 1
      %p68 = por %p66, %p67
      %p70 = scmp.ne.s32.totalorder %s55, %s69
      %p71 = scmp.eq.s32.totalorder %s24, 0
      %p72 = por %p70, %p71
      %s74 = sadd.s32 %s73, 1
      %p77 = scmp.eq.s32.totalorder %s18, 1
      %p78 = scmp.ne.s32.totalorder %s73, %s75
      %p79 = scmp.eq.s32.totalorder %s18, 0
      %p80 = por %p78, %p79
      %p81 = scmp.ne.s32.totalorder %s73, %s75
      %p82 = scmp.eq.s32.totalorder %s23, 1
      %p83 = por %p81, %p82
      %p84 = scmp.ne.s32.totalorder %s75, %s76
      %p85 = scmp.eq.s32.totalorder %s23, 0
      %p86 = por %p84, %p85
      %p87 = scmp.ne.s32.totalorder %s75, %s76
      %p88 = scmp.eq.s32.totalorder %s24, 1
      %p89 = por %p87, %p88
      %p91 = scmp.ne.s32.totalorder %s76, %s90
      %p92 = scmp.eq.s32.totalorder %s24, 0
      %p93 = por %p91, %p92
      %s95 = sadd.s32 %s94, 1
      %p98 = scmp.eq.s32.totalorder %s18, 1
      %p99 = scmp.ne.s32.totalorder %s94, %s96
      %p100 = scmp.eq.s32.totalorder %s18, 0
      %p101 = por %p99, %p100
      %p102 = scmp.ne.s32.totalorder %s94, %s96
      %p103 = scmp.eq.s32.totalorder %s23, 1
      %p104 = por %p102, %p103
      %p105 = scmp.ne.s32.totalorder %s96, %s97
      %p106 = scmp.eq.s32.totalorder %s23, 0
      %p107 = por %p105, %p106
      %p108 = scmp.ne.s32.totalorder %s96, %s97
      %p109 = scmp.eq.s32.totalorder %s24, 1
      %p110 = por %p108, %p109
      %p112 = scmp.ne.s32.totalorder %s97, %s111
      %p113 = scmp.eq.s32.totalorder %s24, 0
      %p114 = por %p112, %p113
      %s115 = ssub.s32 %s18, %s25
      %p116 = scmp.eq.s32.totalorder %s115, 0
      %s118 = sadd.s32 %s117, 1
      %s119 = scalar_select %p116, %s117, %s118
      %p122 = pneg %p116
      %p123 = scmp.eq.s32.totalorder %s18, 1
      %p124 = por %p122, %p123
      %p125 = scmp.ne.s32.totalorder %s117, %s120
      %p126 = scmp.eq.s32.totalorder %s18, 0
      %p127 = por %p125, %p126
      %p128 = scmp.ne.s32.totalorder %s117, %s120
      %p129 = scmp.eq.s32.totalorder %s23, 1
      %p130 = por %p128, %p129
      %p131 = scmp.ne.s32.totalorder %s120, %s121
      %p132 = scmp.eq.s32.totalorder %s23, 0
      %p133 = por %p131, %p132
      %p134 = scmp.ne.s32.totalorder %s120, %s121
      %p135 = scmp.eq.s32.totalorder %s24, 1
      %p136 = por %p134, %p135
      %p138 = scmp.ne.s32.totalorder %s121, %s137
      %p139 = scmp.eq.s32.totalorder %s24, 0
      %p140 = por %p138, %p139
      %p141 = scmp.le.s32.totalorder 1, %s18
      %p142 = scmp.lt.s32.totalorder %s18, 3
      %p143 = pnand %p141, %p142
      %p144 = pneg %p143
      // Predicated region
      $region9: #{tpu_custom_call.1} parent=5 // pred_check
        _
      $region10: #{tpu_custom_call.1} parent=5 // pred_check_branch
        %146 = sbr.rel (%p143) target = $region12
      $region11: #{tpu_custom_call.1} parent=5 // pred_region
        %s147 = ssub.s32 %s18, 1
        // Predicated region
        $region13: #{tpu_custom_call.1} parent=11 // pred_check
          %p148 = pneg %p65
        $region14: #{tpu_custom_call.1} parent=11 // pred_check_branch
          %150 = sbr.rel (%p148) target = $region16
        $region15: #{tpu_custom_call.1} parent=11 // pred_region
          %s152 = ssub.s32 512, 512
          %153 = vsyncadd [#allocation6], %s152
          %s154 = sshll.u32 [#allocation5], 4
          %s155 = int_to_ptr.vmem [resolvable:$true] %s154
          %160 = dma.hbm_to_vmem [thread:$0]  %s1, 512, %s155, [#allocation6], 128, 128, 8
        $region16: #{tpu_custom_call.1} parent=11 // pred_fallthru
          _
        // Predicated region
        $region17: #{tpu_custom_call.1} parent=11 // pred_check
          %p161 = pneg %p86
        $region18: #{tpu_custom_call.1} parent=11 // pred_check_branch
          %163 = sbr.rel (%p161) target = $region20
        $region19: #{tpu_custom_call.1} parent=11 // pred_region
          %s165 = ssub.s32 512, 512
          %166 = vsyncadd [#allocation6], %s165
          %s167 = sshll.u32 [#allocation7], 4
          %s168 = int_to_ptr.vmem [resolvable:$true] %s167
          %173 = dma.hbm_to_vmem [thread:$0]  %s2, 512, %s168, [#allocation6], 128, 128, 8
        $region20: #{tpu_custom_call.1} parent=11 // pred_fallthru
          _
        // Predicated region
        $region21: #{tpu_custom_call.1} parent=11 // pred_check
          %p174 = pneg %p107
        $region22: #{tpu_custom_call.1} parent=11 // pred_check_branch
          %176 = sbr.rel (%p174) target = $region24
        $region23: #{tpu_custom_call.1} parent=11 // pred_region
          %s178 = ssub.s32 256, 256
          %179 = vsyncadd [#allocation9], %s178
          %s180 = sshll.u32 [#allocation8], 4
          %s181 = int_to_ptr.vmem [resolvable:$true] %s180
          %186 = dma.hbm_to_vmem [thread:$0]  %s3, 256, %s181, [#allocation9], 128, 128, 8
        $region24: #{tpu_custom_call.1} parent=11 // pred_fallthru
          _
      $region12: #{tpu_custom_call.1} parent=5 // pred_fallthru
        _
      %p187 = scmp.lt.s32.totalorder %s18, 2
      // Predicated region
      $region25: #{tpu_custom_call.1} parent=5 // pred_check
        %p188 = pneg %p187
      $region26: #{tpu_custom_call.1} parent=5 // pred_check_branch
        %190 = sbr.rel (%p188) target = $region28
      $region27: #{tpu_custom_call.1} parent=5 // pred_region
        // Predicated region
        $region29: #{tpu_custom_call.1} parent=27 // pred_check
          %p191 = pneg %p38
        $region30: #{tpu_custom_call.1} parent=27 // pred_check_branch
          %193 = sbr.rel (%p191) target = $region32
        $region31: #{tpu_custom_call.1} parent=27 // pred_region
          %s194 = sand.u32 %s28, 1
          %s195 = scalar_lea.sflag [#allocation3], %s194
          %s196 = sand.u32 %s28, 1
          %s197 = smul.addr %s196, 8
          %s198 = scalar_lea.vmem [#allocation2], %s197
          %s200 = ssub.s32 128, 128
          %201 = vsyncadd %s195, %s200
          %s202 = smul.addr %s18, 128
          %s203 = scalar_lea.hbm %s0, %s202
          %s205 = sshll.u32 %s198, 4
          %s206 = int_to_ptr.vmem [resolvable:$true] %s205
          %208 = dma.hbm_to_vmem [thread:$0]  %s203, 128, %s206, %s195
        $region32: #{tpu_custom_call.1} parent=27 // pred_fallthru
          _
      $region28: #{tpu_custom_call.1} parent=5 // pred_fallthru
        _
      %p209 = scmp.le.s32.totalorder 1, %s18
      %p210 = scmp.lt.s32.totalorder %s18, 3
      %p211 = pnand %p209, %p210
      %p212 = pneg %p211
      // Predicated region
      $region33: #{tpu_custom_call.1} parent=5 // pred_check
        _
      $region34: #{tpu_custom_call.1} parent=5 // pred_check_branch
        %214 = sbr.rel (%p211) target = $region36
      $region35: #{tpu_custom_call.1} parent=5 // pred_region
        %s215 = ssub.s32 %s18, 1
        %s216 = sand.u32 %s31, 1
        %s217 = scalar_lea.sflag [#allocation3], %s216
        %s218 = sand.u32 %s31, 1
        %s219 = smul.addr %s218, 8
        %s220 = scalar_lea.vmem [#allocation2], %s219
        // Predicated region
        $region37: #{tpu_custom_call.1} parent=35 // pred_check
          %p221 = pneg %p44
        $region38: #{tpu_custom_call.1} parent=35 // pred_check_branch
          %223 = sbr.rel (%p221) target = $region40
        $region39: #{tpu_custom_call.1} parent=35 // pred_region
          %224 = dma.done %s217, 128
        $region40: #{tpu_custom_call.1} parent=35 // pred_fallthru
          _
        // Predicated region
        $region41: #{tpu_custom_call.1} parent=35 // pred_check
          %p225 = pneg %p65
        $region42: #{tpu_custom_call.1} parent=35 // pred_check_branch
          %227 = sbr.rel (%p225) target = $region44
        $region43: #{tpu_custom_call.1} parent=35 // pred_region
          %228 = dma.done [#allocation6], 512
        $region44: #{tpu_custom_call.1} parent=35 // pred_fallthru
          _
        // Predicated region
        $region45: #{tpu_custom_call.1} parent=35 // pred_check
          %p229 = pneg %p86
        $region46: #{tpu_custom_call.1} parent=35 // pred_check_branch
          %231 = sbr.rel (%p229) target = $region48
        $region47: #{tpu_custom_call.1} parent=35 // pred_region
          %232 = dma.done [#allocation6], 512
        $region48: #{tpu_custom_call.1} parent=35 // pred_fallthru
          _
        // Predicated region
        $region49: #{tpu_custom_call.1} parent=35 // pred_check
          %p233 = pneg %p107
        $region50: #{tpu_custom_call.1} parent=35 // pred_check_branch
          %235 = sbr.rel (%p233) target = $region52
        $region51: #{tpu_custom_call.1} parent=35 // pred_region
          %236 = dma.done [#allocation9], 256
        $region52: #{tpu_custom_call.1} parent=35 // pred_fallthru
          _
        %s237 = sand.u32 %s31, 1
        %s238 = scalar_lea.sflag [#allocation3], %s237
        %s239 = sand.u32 %s31, 1
        %s240 = smul.addr %s239, 8
        %s241 = scalar_lea.vmem [#allocation2], %s240
        %p242 = pneg %p44
        %p243 = pneg %p41
        %p244 = pneg %p65
        %p245 = pneg %p62
        %p246 = pneg %p86
        %p247 = pneg %p83
        %p248 = pneg %p107
        %p249 = pneg %p104
        %p250 = pneg %p133
        %p251 = pneg %p130
        %s252 = sand.u32 %s120, 1
        %s253 = scalar_lea.sflag [#allocation4], %s252
        %s254 = sand.u32 %s120, 1
        %s255 = smul.addr %s254, 8
        %s256 = scalar_lea.vmem [#allocation10], %s255
        %v257 = vld [vmem:[%s220] sm:$0xff]
        %v258 = vld [vmem:[#allocation8] sm:$0xf]
        %v259 = vld [vmem:[#allocation8 + $0x4] sm:$0xf]
        %v260 = vld [vmem:[#allocation8 + $0x8] sm:$0x1]
        %v261 = vld [vmem:[#allocation8 + $0x9] sm:$0x1]
        %v262 = vld [vmem:[#allocation8 + $0xa] sm:$0x1]
        %v263 = vld [vmem:[#allocation8 + $0xb] sm:$0x1]
        %v264 = vld [vmem:[#allocation5] sm:$0xff]
        %v265 = vld [vmem:[#allocation5 + $0x8] sm:$0xff]
        %v266 = vld [vmem:[#allocation5 + $0x10] sm:$0xff]
        %v267 = vld [vmem:[#allocation5 + $0x18] sm:$0xff]
        %vm268 = vcmask 261120
        %v270 = vsel %vm268, %v257, 0
        %272 = vmatprep.subr.mxu0 0.0
        %273 = vmatpush1.msra.mxu0 0.0
        %274 = vmatprep.subr.mxu0 0.0
        %275 = vmatpush1.msra.mxu0 0.0
        %276 = vmatprep.subr.mxu0 0.0
        %277 = vmatpush1.msra.mxu0 0.0
        %278 = vmatprep.subr.mxu0 0.0
        %279 = vmatpush1.msra.mxu0 0.0
        %280 = vmatprep.subr.mxu0 0.0
        %281 = vmatpush1.msra.mxu0 0.0
        %282 = vmatprep.subr.mxu0 0.0
        %283 = vmatpush1.msra.mxu0 0.0
        %284 = vmatprep.subr.mxu0 0.0
        %285 = vmatpush1.msra.mxu0 0.0
        %286 = vmatprep.subr.mxu0 0.0
        %287 = vmatpush1.msra.mxu0 0.0
        %288 = vmatprep.subr.mxu0 0.0
        %289 = vmatpush1.msra.mxu0 0.0
        %290 = vmatprep.subr.mxu0 0.0
        %291 = vmatpush1.msra.mxu0 0.0
        %292 = vmatprep.subr.mxu0 0.0
        %293 = vmatpush1.msra.mxu0 0.0
        %294 = vmatprep.subr.mxu0 0.0
        %295 = vmatpush1.msra.mxu0 0.0
        %296 = vmatprep.subr.mxu0 0.0
        %297 = vmatpush1.msra.mxu0 %v267
        %298 = vmatprep.subr.mxu0 0.0
        %299 = vmatpush1.msra.mxu0 %v266
        %300 = vmatprep.subr.mxu0 0.0
        %301 = vmatpush1.msra.mxu0 %v265
        %302 = vmatprep.subr.mxu0 0.0
        %303 = vmatpush1.msra.mxu0 %v264
        %304 = vmatprep.subr.mxu0 0.0
        %305 = vmatpush2.msra.mxu0 0.0
        %306 = vmatprep.subr.mxu0 0.0
        %307 = vmatpush2.msra.mxu0 0.0
        %308 = vmatprep.subr.mxu0 0.0
        %309 = vmatpush2.msra.mxu0 0.0
        %310 = vmatprep.subr.mxu0 0.0
        %311 = vmatpush2.msra.mxu0 0.0
        %312 = vmatprep.subr.mxu0 0.0
        %313 = vmatpush2.msra.mxu0 0.0
        %314 = vmatprep.subr.mxu0 0.0
        %315 = vmatpush2.msra.mxu0 0.0
        %316 = vmatprep.subr.mxu0 0.0
        %317 = vmatpush2.msra.mxu0 0.0
        %318 = vmatprep.subr.mxu0 0.0
        %319 = vmatpush2.msra.mxu0 0.0
        %320 = vmatprep.subr.mxu0 0.0
        %321 = vmatpush2.msra.mxu0 0.0
        %322 = vmatprep.subr.mxu0 0.0
        %323 = vmatpush2.msra.mxu0 0.0
        %324 = vmatprep.subr.mxu0 0.0
        %325 = vmatpush2.msra.mxu0 0.0
        %326 = vmatprep.subr.mxu0 0.0
        %327 = vmatpush2.msra.mxu0 0.0
        %328 = vmatprep.subr.mxu0 0.0
        %329 = vmatpush2.msra.mxu0 0.0
        %330 = vmatprep.subr.mxu0 0.0
        %331 = vmatpush2.msra.mxu0 0.0
        %332 = vmatprep.subr.mxu0 0.0
        %333 = vmatpush2.msra.mxu0 0.0
        %334 = vmatprep.subr.mxu0 0.0
        %335 = vmatpush2.msra.mxu0 0.0
        %336 = vmatprep.mubr.f32.mxu0 0.0
        %337 = vmatmul.mubr.f32.gmra.mxu0 %v270
        %v338 = vpop.f32.mrf.mxu0
        %v339 = vadd.f32 0.0, %v338
        %v340 = vpop.f32.mrf.mxu0
        %341 = vdwg.mxu0
        %v342 = vlaneseq
        %v343 = vshrl.u32 %v342, 7
        %v344 = vsub.s32 0, %v343
        %v345 = vrot.slane %v260, %v344
        %347 = vrot.lane.b32.xlu0 %v345, 64
        %v348 = vpop.permute.xlu0 %347
        %v350 = vadd.f32 %v339, %v348
        %v352 = vsel %vm268, %v259, 0
        %354 = vmatprep.subr.mxu0 0.0
        %355 = vmatpush1.xpose.msra.mxu0 0.0
        %356 = vmatprep.subr.mxu0 0.0
        %357 = vmatpush1.xpose.msra.mxu0 0.0
        %358 = vmatprep.subr.mxu0 0.0
        %359 = vmatpush1.xpose.msra.mxu0 0.0
        %360 = vmatprep.subr.mxu0 0.0
        %361 = vmatpush1.xpose.msra.mxu0 0.0
        %362 = vmatprep.subr.mxu0 0.0
        %363 = vmatpush1.xpose.msra.mxu0 0.0
        %364 = vmatprep.subr.mxu0 0.0
        %365 = vmatpush1.xpose.msra.mxu0 0.0
        %366 = vmatprep.subr.mxu0 0.0
        %367 = vmatpush1.xpose.msra.mxu0 0.0
        %368 = vmatprep.subr.mxu0 0.0
        %369 = vmatpush1.xpose.msra.mxu0 0.0
        %370 = vmatprep.subr.mxu0 0.0
        %371 = vmatpush1.xpose.msra.mxu0 0.0
        %372 = vmatprep.subr.mxu0 0.0
        %373 = vmatpush1.xpose.msra.mxu0 0.0
        %374 = vmatprep.subr.mxu0 0.0
        %375 = vmatpush1.xpose.msra.mxu0 0.0
        %376 = vmatprep.subr.mxu0 0.0
        %377 = vmatpush1.xpose.msra.mxu0 0.0
        %378 = vmatprep.subr.mxu0 0.0
        %379 = vmatpush1.xpose.msra.mxu0 0.0
        %380 = vmatprep.subr.mxu0 0.0
        %381 = vmatpush1.xpose.msra.mxu0 0.0
        %382 = vmatprep.subr.mxu0 0.0
        %383 = vmatpush1.xpose.msra.mxu0 0.0
        %384 = vmatprep.subr.mxu0 0.0
        %385 = vmatpush1.xpose.msra.mxu0 %v270
        %386 = vmatprep.subr.mxu0 0.0
        %387 = vmatpush2.xpose.msra.mxu0 0.0
        %388 = vmatprep.subr.mxu0 0.0
        %389 = vmatpush2.xpose.msra.mxu0 0.0
        %390 = vmatprep.subr.mxu0 0.0
        %391 = vmatpush2.xpose.msra.mxu0 0.0
        %392 = vmatprep.subr.mxu0 0.0
        %393 = vmatpush2.xpose.msra.mxu0 0.0
        %394 = vmatprep.subr.mxu0 0.0
        %395 = vmatpush2.xpose.msra.mxu0 0.0
        %396 = vmatprep.subr.mxu0 0.0
        %397 = vmatpush2.xpose.msra.mxu0 0.0
        %398 = vmatprep.subr.mxu0 0.0
        %399 = vmatpush2.xpose.msra.mxu0 0.0
        %400 = vmatprep.subr.mxu0 0.0
        %401 = vmatpush2.xpose.msra.mxu0 0.0
        %402 = vmatprep.subr.mxu0 0.0
        %403 = vmatpush2.xpose.msra.mxu0 0.0
        %404 = vmatprep.subr.mxu0 0.0
        %405 = vmatpush2.xpose.msra.mxu0 0.0
        %406 = vmatprep.subr.mxu0 0.0
        %407 = vmatpush2.xpose.msra.mxu0 0.0
        %408 = vmatprep.subr.mxu0 0.0
        %409 = vmatpush2.xpose.msra.mxu0 0.0
        %410 = vmatprep.subr.mxu0 0.0
        %411 = vmatpush2.xpose.msra.mxu0 0.0
        %412 = vmatprep.subr.mxu0 0.0
        %413 = vmatpush2.xpose.msra.mxu0 0.0
        %414 = vmatprep.subr.mxu0 0.0
        %415 = vmatpush2.xpose.msra.mxu0 0.0
        %416 = vmatprep.subr.mxu0 0.0
        %417 = vmatpush2.xpose.msra.mxu0 0.0
        %418 = vmatprep.mubr.f32.mxu0 0.0
        %419 = vmatmul.mubr.f32.gmra.mxu0 %v352
        %v420 = vpop.f32.mrf.mxu0
        %v421 = vadd.f32 0.0, %v420
        %v422 = vpop.f32.mrf.mxu0
        %423 = vdwg.mxu0
        %v426 = vunpack.c.l.s4 1966171168
        %v427 = vunpack.c.0.s8 %v426
        %v428 = vlaneseq
        %v429 = vshrl.u32 %v428, 7
        %v430 = vsub.s32 %v427, %v429
        %v431 = vrot.slane %v258, %v430
        %v432 = vcombine.high %v431, %v431
        %v434 = vunpack.c.l.s4 1966171168
        %v435 = vunpack.c.0.s8 %v434
        %v436 = vlaneseq
        %v437 = vshrl.u32 %v436, 7
        %v438 = vsub.s32 %v435, %v437
        %v439 = vrot.slane %v431, %v438
        %v441 = vunpack.c.l.s4 1966171168
        %v442 = vunpack.c.0.s8 %v441
        %v443 = vlaneseq
        %v444 = vshrl.u32 %v443, 7
        %v445 = vsub.s32 %v442, %v444
        %v446 = vrot.slane %v432, %v445
        %v447 = vcombine.high %v439, %v439
        %v448 = vcombine.high %v446, %v446
        %v449 = vlaneseq
        %v450 = vshrl.u32 %v449, 7
        %v451 = vsub.s32 0, %v450
        %v452 = vrot.slane %v439, %v451
        %v453 = vlaneseq
        %v454 = vshrl.u32 %v453, 7
        %v455 = vsub.s32 0, %v454
        %v456 = vrot.slane %v446, %v455
        %v457 = vlaneseq
        %v458 = vshrl.u32 %v457, 7
        %v459 = vsub.s32 0, %v458
        %v460 = vrot.slane %v447, %v459
        %v461 = vlaneseq
        %v462 = vshrl.u32 %v461, 7
        %v463 = vsub.s32 0, %v462
        %v464 = vrot.slane %v448, %v463
        %v469 = vmul.f32 %v452, %v339
        %v470 = vmul.f32 %v456, %v339
        %v471 = vmul.f32 %v460, %v339
        %v472 = vmul.f32 %v464, %v339
        %474 = vrot.lane.b32.xlu0 %v339, 96
        %v475 = vpop.permute.xlu0 %474
        %v477 = vsel %vm268, %v469, 0
        %v480 = vsel %vm268, %v470, 0
        %v483 = vsel %vm268, %v471, 0
        %v486 = vsel %vm268, %v472, 0
        %v488 = vsel %vm268, %v475, 0
        %490 = vmatprep.subr.mxu0 0.0
        %491 = vmatpush1.xpose.msra.mxu0 0.0
        %492 = vmatprep.subr.mxu0 0.0
        %493 = vmatpush1.xpose.msra.mxu0 0.0
        %494 = vmatprep.subr.mxu0 0.0
        %495 = vmatpush1.xpose.msra.mxu0 0.0
        %496 = vmatprep.subr.mxu0 0.0
        %497 = vmatpush1.xpose.msra.mxu0 0.0
        %498 = vmatprep.subr.mxu0 0.0
        %499 = vmatpush1.xpose.msra.mxu0 0.0
        %500 = vmatprep.subr.mxu0 0.0
        %501 = vmatpush1.xpose.msra.mxu0 0.0
        %502 = vmatprep.subr.mxu0 0.0
        %503 = vmatpush1.xpose.msra.mxu0 0.0
        %504 = vmatprep.subr.mxu0 0.0
        %505 = vmatpush1.xpose.msra.mxu0 0.0
        %506 = vmatprep.subr.mxu0 0.0
        %507 = vmatpush1.xpose.msra.mxu0 0.0
        %508 = vmatprep.subr.mxu0 0.0
        %509 = vmatpush1.xpose.msra.mxu0 0.0
        %510 = vmatprep.subr.mxu0 0.0
        %511 = vmatpush1.xpose.msra.mxu0 0.0
        %512 = vmatprep.subr.mxu0 0.0
        %513 = vmatpush1.xpose.msra.mxu0 0.0
        %514 = vmatprep.subr.mxu0 0.0
        %515 = vmatpush1.xpose.msra.mxu0 0.0
        %516 = vmatprep.subr.mxu0 0.0
        %517 = vmatpush1.xpose.msra.mxu0 0.0
        %518 = vmatprep.subr.mxu0 0.0
        %519 = vmatpush1.xpose.msra.mxu0 0.0
        %520 = vmatprep.subr.mxu0 0.0
        %521 = vmatpush1.xpose.msra.mxu0 %v488
        %522 = vmatprep.subr.mxu0 0.0
        %523 = vmatpush2.xpose.msra.mxu0 0.0
        %524 = vmatprep.subr.mxu0 0.0
        %525 = vmatpush2.xpose.msra.mxu0 0.0
        %526 = vmatprep.subr.mxu0 0.0
        %527 = vmatpush2.xpose.msra.mxu0 0.0
        %528 = vmatprep.subr.mxu0 0.0
        %529 = vmatpush2.xpose.msra.mxu0 0.0
        %530 = vmatprep.subr.mxu0 0.0
        %531 = vmatpush2.xpose.msra.mxu0 0.0
        %532 = vmatprep.subr.mxu0 0.0
        %533 = vmatpush2.xpose.msra.mxu0 0.0
        %534 = vmatprep.subr.mxu0 0.0
        %535 = vmatpush2.xpose.msra.mxu0 0.0
        %536 = vmatprep.subr.mxu0 0.0
        %537 = vmatpush2.xpose.msra.mxu0 0.0
        %538 = vmatprep.subr.mxu0 0.0
        %539 = vmatpush2.xpose.msra.mxu0 0.0
        %540 = vmatprep.subr.mxu0 0.0
        %541 = vmatpush2.xpose.msra.mxu0 0.0
        %542 = vmatprep.subr.mxu0 0.0
        %543 = vmatpush2.xpose.msra.mxu0 0.0
        %544 = vmatprep.subr.mxu0 0.0
        %545 = vmatpush2.xpose.msra.mxu0 0.0
        %546 = vmatprep.subr.mxu0 0.0
        %547 = vmatpush2.xpose.msra.mxu0 0.0
        %548 = vmatprep.subr.mxu0 0.0
        %549 = vmatpush2.xpose.msra.mxu0 0.0
        %550 = vmatprep.subr.mxu0 0.0
        %551 = vmatpush2.xpose.msra.mxu0 0.0
        %552 = vmatprep.subr.mxu0 0.0
        %553 = vmatpush2.xpose.msra.mxu0 0.0
        %554 = vmatprep.mubr.f32.mxu0 0.0
        %555 = vmatmul.mubr.f32.gmra.mxu0 %v477
        %v556 = vpop.f32.mrf.mxu0
        %v557 = vadd.f32 0.0, %v556
        %v558 = vpop.f32.mrf.mxu0
        %559 = vmatprep.mubr.f32.mxu0 0.0
        %560 = vmatmul.mubr.f32.gmra.mxu0 %v480
        %v561 = vpop.f32.mrf.mxu0
        %v562 = vadd.f32 0.0, %v561
        %v563 = vpop.f32.mrf.mxu0
        %564 = vmatprep.mubr.f32.mxu0 0.0
        %565 = vmatmul.mubr.f32.gmra.mxu0 %v483
        %v566 = vpop.f32.mrf.mxu0
        %v567 = vadd.f32 0.0, %v566
        %v568 = vpop.f32.mrf.mxu0
        %569 = vmatprep.mubr.f32.mxu0 0.0
        %570 = vmatmul.mubr.f32.gmra.mxu0 %v486
        %v571 = vpop.f32.mrf.mxu0
        %v572 = vadd.f32 0.0, %v571
        %v573 = vpop.f32.mrf.mxu0
        %574 = vdwg.mxu0
        %v577 = vunpack.c.l.s4 1966171168
        %v578 = vunpack.c.0.s8 %v577
        %v579 = vlaneseq
        %v580 = vshrl.u32 %v579, 7
        %v581 = vsub.s32 %v578, %v580
        %v582 = vrot.slane %v421, %v581
        %v583 = vcombine.high %v582, %v582
        %v585 = vunpack.c.l.s4 1966171168
        %v586 = vunpack.c.0.s8 %v585
        %v587 = vlaneseq
        %v588 = vshrl.u32 %v587, 7
        %v589 = vsub.s32 %v586, %v588
        %v590 = vrot.slane %v582, %v589
        %v592 = vunpack.c.l.s4 1966171168
        %v593 = vunpack.c.0.s8 %v592
        %v594 = vlaneseq
        %v595 = vshrl.u32 %v594, 7
        %v596 = vsub.s32 %v593, %v595
        %v597 = vrot.slane %v583, %v596
        %v598 = vcombine.high %v590, %v590
        %v599 = vcombine.high %v597, %v597
        %v600 = vlaneseq
        %v601 = vshrl.u32 %v600, 7
        %v602 = vsub.s32 0, %v601
        %v603 = vrot.slane %v590, %v602
        %v604 = vlaneseq
        %v605 = vshrl.u32 %v604, 7
        %v606 = vsub.s32 0, %v605
        %v607 = vrot.slane %v597, %v606
        %v608 = vlaneseq
        %v609 = vshrl.u32 %v608, 7
        %v610 = vsub.s32 0, %v609
        %v611 = vrot.slane %v598, %v610
        %v612 = vlaneseq
        %v613 = vshrl.u32 %v612, 7
        %v614 = vsub.s32 0, %v613
        %v615 = vrot.slane %v599, %v614
        %v620 = vadd.f32 %v557, %v603
        %v621 = vadd.f32 %v562, %v607
        %v622 = vadd.f32 %v567, %v611
        %v623 = vadd.f32 %v572, %v615
        %vm624 = vcmask 64512
        %v625 = vsel %vm624, %v620, -inf
        %626 = vmax.xlane.f32.xlu0 %v625
        %v627 = vpop.xlane.xlu0 %626
        %v628 = vsel %vm624, %v621, -inf
        %629 = vmax.xlane.f32.xlu0 %v628
        %v630 = vpop.xlane.xlu0 %629
        %v631 = vsel %vm624, %v622, -inf
        %632 = vmax.xlane.f32.xlu0 %v631
        %v633 = vpop.xlane.xlu0 %632
        %v634 = vsel %vm624, %v623, -inf
        %635 = vmax.xlane.f32.xlu0 %v634
        %v636 = vpop.xlane.xlu0 %635
        %v637 = vsub.f32 %v620, %v627
        %v638 = vsub.f32 %v621, %v630
        %v639 = vsub.f32 %v622, %v633
        %v640 = vsub.f32 %v623, %v636
        %v641 = vmul.f32 %v637, 1.442695
        %v642 = vpow.pop %v641
        %v643 = vmul.f32 %v638, 1.442695
        %v644 = vpow.pop %v643
        %v645 = vmul.f32 %v639, 1.442695
        %v646 = vpow.pop %v645
        %v647 = vmul.f32 %v640, 1.442695
        %v648 = vpow.pop %v647
        %v649 = vsel %vm624, %v642, 0.0
        %650 = vadd.xlane.f32.xlu0 %v649
        %v651 = vpop.xlane.xlu0 %650
        %v652 = vsel %vm624, %v644, 0.0
        %653 = vadd.xlane.f32.xlu0 %v652
        %v654 = vpop.xlane.xlu0 %653
        %v655 = vsel %vm624, %v646, 0.0
        %656 = vadd.xlane.f32.xlu0 %v655
        %v657 = vpop.xlane.xlu0 %656
        %v658 = vsel %vm624, %v648, 0.0
        %659 = vadd.xlane.f32.xlu0 %v658
        %v660 = vpop.xlane.xlu0 %659
        %v661 = vrcp.pop %v651
        %v662 = vmul.f32 %v642, %v661
        %v663 = vrcp.pop %v654
        %v664 = vmul.f32 %v644, %v663
        %v665 = vrcp.pop %v657
        %v666 = vmul.f32 %v646, %v665
        %v667 = vrcp.pop %v660
        %v668 = vmul.f32 %v648, %v667
        %670 = vrot.lane.b32.xlu0 %v350, 120
        %v671 = vpop.permute.xlu0 %670
        %672 = vrot.lane.b32.xlu0 %v350, 112
        %v673 = vpop.permute.xlu0 %672
        %674 = vrot.lane.b32.xlu0 %v350, 104
        %v675 = vpop.permute.xlu0 %674
        %676 = vrot.lane.b32.xlu0 %v350, 64
        %v677 = vpop.permute.xlu0 %676
        %v680 = vsel %vm624, %v662, 0
        %682 = vmatprep.subr.mxu0 0.0
        %683 = vmatpush1.msra.mxu0 0.0
        %684 = vmatprep.subr.mxu0 0.0
        %685 = vmatpush1.msra.mxu0 0.0
        %686 = vmatprep.subr.mxu0 0.0
        %687 = vmatpush1.msra.mxu0 0.0
        %688 = vmatprep.subr.mxu0 0.0
        %689 = vmatpush1.msra.mxu0 0.0
        %690 = vmatprep.subr.mxu0 0.0
        %691 = vmatpush1.msra.mxu0 0.0
        %692 = vmatprep.subr.mxu0 0.0
        %693 = vmatpush1.msra.mxu0 0.0
        %694 = vmatprep.subr.mxu0 0.0
        %695 = vmatpush1.msra.mxu0 0.0
        %696 = vmatprep.subr.mxu0 0.0
        %697 = vmatpush1.msra.mxu0 0.0
        %698 = vmatprep.subr.mxu0 0.0
        %699 = vmatpush1.msra.mxu0 0.0
        %700 = vmatprep.subr.mxu0 0.0
        %701 = vmatpush1.msra.mxu0 0.0
        %702 = vmatprep.subr.mxu0 0.0
        %703 = vmatpush1.msra.mxu0 0.0
        %704 = vmatprep.subr.mxu0 0.0
        %705 = vmatpush1.msra.mxu0 0.0
        %706 = vmatprep.subr.mxu0 0.0
        %707 = vmatpush1.msra.mxu0 0.0
        %708 = vmatprep.subr.mxu0 0.0
        %709 = vmatpush1.msra.mxu0 0.0
        %710 = vmatprep.subr.mxu0 0.0
        %711 = vmatpush1.msra.mxu0 0.0
        %712 = vmatprep.subr.mxu0 0.0
        %713 = vmatpush1.msra.mxu0 %v677
        %714 = vmatprep.subr.mxu0 0.0
        %715 = vmatpush2.msra.mxu0 0.0
        %716 = vmatprep.subr.mxu0 0.0
        %717 = vmatpush2.msra.mxu0 0.0
        %718 = vmatprep.subr.mxu0 0.0
        %719 = vmatpush2.msra.mxu0 0.0
        %720 = vmatprep.subr.mxu0 0.0
        %721 = vmatpush2.msra.mxu0 0.0
        %722 = vmatprep.subr.mxu0 0.0
        %723 = vmatpush2.msra.mxu0 0.0
        %724 = vmatprep.subr.mxu0 0.0
        %725 = vmatpush2.msra.mxu0 0.0
        %726 = vmatprep.subr.mxu0 0.0
        %727 = vmatpush2.msra.mxu0 0.0
        %728 = vmatprep.subr.mxu0 0.0
        %729 = vmatpush2.msra.mxu0 0.0
        %730 = vmatprep.subr.mxu0 0.0
        %731 = vmatpush2.msra.mxu0 0.0
        %732 = vmatprep.subr.mxu0 0.0
        %733 = vmatpush2.msra.mxu0 0.0
        %734 = vmatprep.subr.mxu0 0.0
        %735 = vmatpush2.msra.mxu0 0.0
        %736 = vmatprep.subr.mxu0 0.0
        %737 = vmatpush2.msra.mxu0 0.0
        %738 = vmatprep.subr.mxu0 0.0
        %739 = vmatpush2.msra.mxu0 0.0
        %740 = vmatprep.subr.mxu0 0.0
        %741 = vmatpush2.msra.mxu0 0.0
        %742 = vmatprep.subr.mxu0 0.0
        %743 = vmatpush2.msra.mxu0 0.0
        %744 = vmatprep.subr.mxu0 0.0
        %745 = vmatpush2.msra.mxu0 0.0
        %746 = vmatprep.mubr.f32.mxu0 0.0
        %747 = vmatmul.mubr.f32.gmra.mxu0 %v680
        %v748 = vpop.f32.mrf.mxu0
        %v749 = vadd.f32 0.0, %v748
        %v750 = vpop.f32.mrf.mxu0
        %751 = vdwg.mxu0
        %752 = vrot.lane.b32.xlu0 %v671, 64
        %v753 = vpop.permute.xlu0 %752
        %v756 = vsel %vm624, %v664, 0
        %758 = vmatprep.subr.mxu0 0.0
        %759 = vmatpush1.msra.mxu0 0.0
        %760 = vmatprep.subr.mxu0 0.0
        %761 = vmatpush1.msra.mxu0 0.0
        %762 = vmatprep.subr.mxu0 0.0
        %763 = vmatpush1.msra.mxu0 0.0
        %764 = vmatprep.subr.mxu0 0.0
        %765 = vmatpush1.msra.mxu0 0.0
        %766 = vmatprep.subr.mxu0 0.0
        %767 = vmatpush1.msra.mxu0 0.0
        %768 = vmatprep.subr.mxu0 0.0
        %769 = vmatpush1.msra.mxu0 0.0
        %770 = vmatprep.subr.mxu0 0.0
        %771 = vmatpush1.msra.mxu0 0.0
        %772 = vmatprep.subr.mxu0 0.0
        %773 = vmatpush1.msra.mxu0 0.0
        %774 = vmatprep.subr.mxu0 0.0
        %775 = vmatpush1.msra.mxu0 0.0
        %776 = vmatprep.subr.mxu0 0.0
        %777 = vmatpush1.msra.mxu0 0.0
        %778 = vmatprep.subr.mxu0 0.0
        %779 = vmatpush1.msra.mxu0 0.0
        %780 = vmatprep.subr.mxu0 0.0
        %781 = vmatpush1.msra.mxu0 0.0
        %782 = vmatprep.subr.mxu0 0.0
        %783 = vmatpush1.msra.mxu0 0.0
        %784 = vmatprep.subr.mxu0 0.0
        %785 = vmatpush1.msra.mxu0 0.0
        %786 = vmatprep.subr.mxu0 0.0
        %787 = vmatpush1.msra.mxu0 0.0
        %788 = vmatprep.subr.mxu0 0.0
        %789 = vmatpush1.msra.mxu0 %v753
        %790 = vmatprep.subr.mxu0 0.0
        %791 = vmatpush2.msra.mxu0 0.0
        %792 = vmatprep.subr.mxu0 0.0
        %793 = vmatpush2.msra.mxu0 0.0
        %794 = vmatprep.subr.mxu0 0.0
        %795 = vmatpush2.msra.mxu0 0.0
        %796 = vmatprep.subr.mxu0 0.0
        %797 = vmatpush2.msra.mxu0 0.0
        %798 = vmatprep.subr.mxu0 0.0
        %799 = vmatpush2.msra.mxu0 0.0
        %800 = vmatprep.subr.mxu0 0.0
        %801 = vmatpush2.msra.mxu0 0.0
        %802 = vmatprep.subr.mxu0 0.0
        %803 = vmatpush2.msra.mxu0 0.0
        %804 = vmatprep.subr.mxu0 0.0
        %805 = vmatpush2.msra.mxu0 0.0
        %806 = vmatprep.subr.mxu0 0.0
        %807 = vmatpush2.msra.mxu0 0.0
        %808 = vmatprep.subr.mxu0 0.0
        %809 = vmatpush2.msra.mxu0 0.0
        %810 = vmatprep.subr.mxu0 0.0
        %811 = vmatpush2.msra.mxu0 0.0
        %812 = vmatprep.subr.mxu0 0.0
        %813 = vmatpush2.msra.mxu0 0.0
        %814 = vmatprep.subr.mxu0 0.0
        %815 = vmatpush2.msra.mxu0 0.0
        %816 = vmatprep.subr.mxu0 0.0
        %817 = vmatpush2.msra.mxu0 0.0
        %818 = vmatprep.subr.mxu0 0.0
        %819 = vmatpush2.msra.mxu0 0.0
        %820 = vmatprep.subr.mxu0 0.0
        %821 = vmatpush2.msra.mxu0 0.0
        %822 = vmatprep.mubr.f32.mxu0 0.0
        %823 = vmatmul.mubr.f32.gmra.mxu0 %v756
        %v824 = vpop.f32.mrf.mxu0
        %v825 = vadd.f32 0.0, %v824
        %v826 = vpop.f32.mrf.mxu0
        %827 = vdwg.mxu0
        %828 = vrot.lane.b32.xlu0 %v673, 64
        %v829 = vpop.permute.xlu0 %828
        %v832 = vsel %vm624, %v666, 0
        %834 = vmatprep.subr.mxu0 0.0
        %835 = vmatpush1.msra.mxu0 0.0
        %836 = vmatprep.subr.mxu0 0.0
        %837 = vmatpush1.msra.mxu0 0.0
        %838 = vmatprep.subr.mxu0 0.0
        %839 = vmatpush1.msra.mxu0 0.0
        %840 = vmatprep.subr.mxu0 0.0
        %841 = vmatpush1.msra.mxu0 0.0
        %842 = vmatprep.subr.mxu0 0.0
        %843 = vmatpush1.msra.mxu0 0.0
        %844 = vmatprep.subr.mxu0 0.0
        %845 = vmatpush1.msra.mxu0 0.0
        %846 = vmatprep.subr.mxu0 0.0
        %847 = vmatpush1.msra.mxu0 0.0
        %848 = vmatprep.subr.mxu0 0.0
        %849 = vmatpush1.msra.mxu0 0.0
        %850 = vmatprep.subr.mxu0 0.0
        %851 = vmatpush1.msra.mxu0 0.0
        %852 = vmatprep.subr.mxu0 0.0
        %853 = vmatpush1.msra.mxu0 0.0
        %854 = vmatprep.subr.mxu0 0.0
        %855 = vmatpush1.msra.mxu0 0.0
        %856 = vmatprep.subr.mxu0 0.0
        %857 = vmatpush1.msra.mxu0 0.0
        %858 = vmatprep.subr.mxu0 0.0
        %859 = vmatpush1.msra.mxu0 0.0
        %860 = vmatprep.subr.mxu0 0.0
        %861 = vmatpush1.msra.mxu0 0.0
        %862 = vmatprep.subr.mxu0 0.0
        %863 = vmatpush1.msra.mxu0 0.0
        %864 = vmatprep.subr.mxu0 0.0
        %865 = vmatpush1.msra.mxu0 %v829
        %866 = vmatprep.subr.mxu0 0.0
        %867 = vmatpush2.msra.mxu0 0.0
        %868 = vmatprep.subr.mxu0 0.0
        %869 = vmatpush2.msra.mxu0 0.0
        %870 = vmatprep.subr.mxu0 0.0
        %871 = vmatpush2.msra.mxu0 0.0
        %872 = vmatprep.subr.mxu0 0.0
        %873 = vmatpush2.msra.mxu0 0.0
        %874 = vmatprep.subr.mxu0 0.0
        %875 = vmatpush2.msra.mxu0 0.0
        %876 = vmatprep.subr.mxu0 0.0
        %877 = vmatpush2.msra.mxu0 0.0
        %878 = vmatprep.subr.mxu0 0.0
        %879 = vmatpush2.msra.mxu0 0.0
        %880 = vmatprep.subr.mxu0 0.0
        %881 = vmatpush2.msra.mxu0 0.0
        %882 = vmatprep.subr.mxu0 0.0
        %883 = vmatpush2.msra.mxu0 0.0
        %884 = vmatprep.subr.mxu0 0.0
        %885 = vmatpush2.msra.mxu0 0.0
        %886 = vmatprep.subr.mxu0 0.0
        %887 = vmatpush2.msra.mxu0 0.0
        %888 = vmatprep.subr.mxu0 0.0
        %889 = vmatpush2.msra.mxu0 0.0
        %890 = vmatprep.subr.mxu0 0.0
        %891 = vmatpush2.msra.mxu0 0.0
        %892 = vmatprep.subr.mxu0 0.0
        %893 = vmatpush2.msra.mxu0 0.0
        %894 = vmatprep.subr.mxu0 0.0
        %895 = vmatpush2.msra.mxu0 0.0
        %896 = vmatprep.subr.mxu0 0.0
        %897 = vmatpush2.msra.mxu0 0.0
        %898 = vmatprep.mubr.f32.mxu0 0.0
        %899 = vmatmul.mubr.f32.gmra.mxu0 %v832
        %v900 = vpop.f32.mrf.mxu0
        %v901 = vadd.f32 0.0, %v900
        %v902 = vpop.f32.mrf.mxu0
        %903 = vdwg.mxu0
        %904 = vrot.lane.b32.xlu0 %v675, 64
        %v905 = vpop.permute.xlu0 %904
        %v908 = vsel %vm624, %v668, 0
        %910 = vmatprep.subr.mxu0 0.0
        %911 = vmatpush1.msra.mxu0 0.0
        %912 = vmatprep.subr.mxu0 0.0
        %913 = vmatpush1.msra.mxu0 0.0
        %914 = vmatprep.subr.mxu0 0.0
        %915 = vmatpush1.msra.mxu0 0.0
        %916 = vmatprep.subr.mxu0 0.0
        %917 = vmatpush1.msra.mxu0 0.0
        %918 = vmatprep.subr.mxu0 0.0
        %919 = vmatpush1.msra.mxu0 0.0
        %920 = vmatprep.subr.mxu0 0.0
        %921 = vmatpush1.msra.mxu0 0.0
        %922 = vmatprep.subr.mxu0 0.0
        %923 = vmatpush1.msra.mxu0 0.0
        %924 = vmatprep.subr.mxu0 0.0
        %925 = vmatpush1.msra.mxu0 0.0
        %926 = vmatprep.subr.mxu0 0.0
        %927 = vmatpush1.msra.mxu0 0.0
        %928 = vmatprep.subr.mxu0 0.0
        %929 = vmatpush1.msra.mxu0 0.0
        %930 = vmatprep.subr.mxu0 0.0
        %931 = vmatpush1.msra.mxu0 0.0
        %932 = vmatprep.subr.mxu0 0.0
        %933 = vmatpush1.msra.mxu0 0.0
        %934 = vmatprep.subr.mxu0 0.0
        %935 = vmatpush1.msra.mxu0 0.0
        %936 = vmatprep.subr.mxu0 0.0
        %937 = vmatpush1.msra.mxu0 0.0
        %938 = vmatprep.subr.mxu0 0.0
        %939 = vmatpush1.msra.mxu0 0.0
        %940 = vmatprep.subr.mxu0 0.0
        %941 = vmatpush1.msra.mxu0 %v905
        %942 = vmatprep.subr.mxu0 0.0
        %943 = vmatpush2.msra.mxu0 0.0
        %944 = vmatprep.subr.mxu0 0.0
        %945 = vmatpush2.msra.mxu0 0.0
        %946 = vmatprep.subr.mxu0 0.0
        %947 = vmatpush2.msra.mxu0 0.0
        %948 = vmatprep.subr.mxu0 0.0
        %949 = vmatpush2.msra.mxu0 0.0
        %950 = vmatprep.subr.mxu0 0.0
        %951 = vmatpush2.msra.mxu0 0.0
        %952 = vmatprep.subr.mxu0 0.0
        %953 = vmatpush2.msra.mxu0 0.0
        %954 = vmatprep.subr.mxu0 0.0
        %955 = vmatpush2.msra.mxu0 0.0
        %956 = vmatprep.subr.mxu0 0.0
        %957 = vmatpush2.msra.mxu0 0.0
        %958 = vmatprep.subr.mxu0 0.0
        %959 = vmatpush2.msra.mxu0 0.0
        %960 = vmatprep.subr.mxu0 0.0
        %961 = vmatpush2.msra.mxu0 0.0
        %962 = vmatprep.subr.mxu0 0.0
        %963 = vmatpush2.msra.mxu0 0.0
        %964 = vmatprep.subr.mxu0 0.0
        %965 = vmatpush2.msra.mxu0 0.0
        %966 = vmatprep.subr.mxu0 0.0
        %967 = vmatpush2.msra.mxu0 0.0
        %968 = vmatprep.subr.mxu0 0.0
        %969 = vmatpush2.msra.mxu0 0.0
        %970 = vmatprep.subr.mxu0 0.0
        %971 = vmatpush2.msra.mxu0 0.0
        %972 = vmatprep.subr.mxu0 0.0
        %973 = vmatpush2.msra.mxu0 0.0
        %974 = vmatprep.mubr.f32.mxu0 0.0
        %975 = vmatmul.mubr.f32.gmra.mxu0 %v908
        %v976 = vpop.f32.mrf.mxu0
        %v977 = vadd.f32 0.0, %v976
        %v978 = vpop.f32.mrf.mxu0
        %979 = vdwg.mxu0
        %v980 = vld [vmem:[#allocation7] sm:$0xff]
        %v981 = vld [vmem:[#allocation7 + $0x8] sm:$0xff]
        %v982 = vld [vmem:[#allocation7 + $0x10] sm:$0xff]
        %v983 = vld [vmem:[#allocation7 + $0x18] sm:$0xff]
        %v985 = vsel %vm624, %v749, 0
        %987 = vmatprep.subr.mxu0 0.0
        %988 = vmatpush1.msra.mxu0 0.0
        %989 = vmatprep.subr.mxu0 0.0
        %990 = vmatpush1.msra.mxu0 0.0
        %991 = vmatprep.subr.mxu0 0.0
        %992 = vmatpush1.msra.mxu0 0.0
        %993 = vmatprep.subr.mxu0 0.0
        %994 = vmatpush1.msra.mxu0 0.0
        %995 = vmatprep.subr.mxu0 0.0
        %996 = vmatpush1.msra.mxu0 0.0
        %997 = vmatprep.subr.mxu0 0.0
        %998 = vmatpush1.msra.mxu0 0.0
        %999 = vmatprep.subr.mxu0 0.0
        %1000 = vmatpush1.msra.mxu0 0.0
        %1001 = vmatprep.subr.mxu0 0.0
        %1002 = vmatpush1.msra.mxu0 0.0
        %1003 = vmatprep.subr.mxu0 0.0
        %1004 = vmatpush1.msra.mxu0 0.0
        %1005 = vmatprep.subr.mxu0 0.0
        %1006 = vmatpush1.msra.mxu0 0.0
        %1007 = vmatprep.subr.mxu0 0.0
        %1008 = vmatpush1.msra.mxu0 0.0
        %1009 = vmatprep.subr.mxu0 0.0
        %1010 = vmatpush1.msra.mxu0 0.0
        %1011 = vmatprep.subr.mxu0 0.0
        %1012 = vmatpush1.msra.mxu0 0.0
        %1013 = vmatprep.subr.mxu0 0.0
        %1014 = vmatpush1.msra.mxu0 0.0
        %1015 = vmatprep.subr.mxu0 0.0
        %1016 = vmatpush1.msra.mxu0 0.0
        %1017 = vmatprep.subr.mxu0 0.0
        %1018 = vmatpush1.msra.mxu0 %v980
        %1019 = vmatprep.subr.mxu0 0.0
        %1020 = vmatpush2.msra.mxu0 0.0
        %1021 = vmatprep.subr.mxu0 0.0
        %1022 = vmatpush2.msra.mxu0 0.0
        %1023 = vmatprep.subr.mxu0 0.0
        %1024 = vmatpush2.msra.mxu0 0.0
        %1025 = vmatprep.subr.mxu0 0.0
        %1026 = vmatpush2.msra.mxu0 0.0
        %1027 = vmatprep.subr.mxu0 0.0
        %1028 = vmatpush2.msra.mxu0 0.0
        %1029 = vmatprep.subr.mxu0 0.0
        %1030 = vmatpush2.msra.mxu0 0.0
        %1031 = vmatprep.subr.mxu0 0.0
        %1032 = vmatpush2.msra.mxu0 0.0
        %1033 = vmatprep.subr.mxu0 0.0
        %1034 = vmatpush2.msra.mxu0 0.0
        %1035 = vmatprep.subr.mxu0 0.0
        %1036 = vmatpush2.msra.mxu0 0.0
        %1037 = vmatprep.subr.mxu0 0.0
        %1038 = vmatpush2.msra.mxu0 0.0
        %1039 = vmatprep.subr.mxu0 0.0
        %1040 = vmatpush2.msra.mxu0 0.0
        %1041 = vmatprep.subr.mxu0 0.0
        %1042 = vmatpush2.msra.mxu0 0.0
        %1043 = vmatprep.subr.mxu0 0.0
        %1044 = vmatpush2.msra.mxu0 0.0
        %1045 = vmatprep.subr.mxu0 0.0
        %1046 = vmatpush2.msra.mxu0 0.0
        %1047 = vmatprep.subr.mxu0 0.0
        %1048 = vmatpush2.msra.mxu0 0.0
        %1049 = vmatprep.subr.mxu0 0.0
        %1050 = vmatpush2.msra.mxu0 0.0
        %1051 = vmatprep.mubr.f32.mxu0 0.0
        %1052 = vmatmul.mubr.f32.gmra.mxu0 %v985
        %v1053 = vpop.f32.mrf.mxu0
        %v1054 = vadd.f32 0.0, %v1053
        %v1055 = vpop.f32.mrf.mxu0
        %1056 = vdwg.mxu0
        %v1058 = vsel %vm624, %v825, 0
        %1060 = vmatprep.subr.mxu0 0.0
        %1061 = vmatpush1.msra.mxu0 0.0
        %1062 = vmatprep.subr.mxu0 0.0
        %1063 = vmatpush1.msra.mxu0 0.0
        %1064 = vmatprep.subr.mxu0 0.0
        %1065 = vmatpush1.msra.mxu0 0.0
        %1066 = vmatprep.subr.mxu0 0.0
        %1067 = vmatpush1.msra.mxu0 0.0
        %1068 = vmatprep.subr.mxu0 0.0
        %1069 = vmatpush1.msra.mxu0 0.0
        %1070 = vmatprep.subr.mxu0 0.0
        %1071 = vmatpush1.msra.mxu0 0.0
        %1072 = vmatprep.subr.mxu0 0.0
        %1073 = vmatpush1.msra.mxu0 0.0
        %1074 = vmatprep.subr.mxu0 0.0
        %1075 = vmatpush1.msra.mxu0 0.0
        %1076 = vmatprep.subr.mxu0 0.0
        %1077 = vmatpush1.msra.mxu0 0.0
        %1078 = vmatprep.subr.mxu0 0.0
        %1079 = vmatpush1.msra.mxu0 0.0
        %1080 = vmatprep.subr.mxu0 0.0
        %1081 = vmatpush1.msra.mxu0 0.0
        %1082 = vmatprep.subr.mxu0 0.0
        %1083 = vmatpush1.msra.mxu0 0.0
        %1084 = vmatprep.subr.mxu0 0.0
        %1085 = vmatpush1.msra.mxu0 0.0
        %1086 = vmatprep.subr.mxu0 0.0
        %1087 = vmatpush1.msra.mxu0 0.0
        %1088 = vmatprep.subr.mxu0 0.0
        %1089 = vmatpush1.msra.mxu0 0.0
        %1090 = vmatprep.subr.mxu0 0.0
        %1091 = vmatpush1.msra.mxu0 %v981
        %1092 = vmatprep.subr.mxu0 0.0
        %1093 = vmatpush2.msra.mxu0 0.0
        %1094 = vmatprep.subr.mxu0 0.0
        %1095 = vmatpush2.msra.mxu0 0.0
        %1096 = vmatprep.subr.mxu0 0.0
        %1097 = vmatpush2.msra.mxu0 0.0
        %1098 = vmatprep.subr.mxu0 0.0
        %1099 = vmatpush2.msra.mxu0 0.0
        %1100 = vmatprep.subr.mxu0 0.0
        %1101 = vmatpush2.msra.mxu0 0.0
        %1102 = vmatprep.subr.mxu0 0.0
        %1103 = vmatpush2.msra.mxu0 0.0
        %1104 = vmatprep.subr.mxu0 0.0
        %1105 = vmatpush2.msra.mxu0 0.0
        %1106 = vmatprep.subr.mxu0 0.0
        %1107 = vmatpush2.msra.mxu0 0.0
        %1108 = vmatprep.subr.mxu0 0.0
        %1109 = vmatpush2.msra.mxu0 0.0
        %1110 = vmatprep.subr.mxu0 0.0
        %1111 = vmatpush2.msra.mxu0 0.0
        %1112 = vmatprep.subr.mxu0 0.0
        %1113 = vmatpush2.msra.mxu0 0.0
        %1114 = vmatprep.subr.mxu0 0.0
        %1115 = vmatpush2.msra.mxu0 0.0
        %1116 = vmatprep.subr.mxu0 0.0
        %1117 = vmatpush2.msra.mxu0 0.0
        %1118 = vmatprep.subr.mxu0 0.0
        %1119 = vmatpush2.msra.mxu0 0.0
        %1120 = vmatprep.subr.mxu0 0.0
        %1121 = vmatpush2.msra.mxu0 0.0
        %1122 = vmatprep.subr.mxu0 0.0
        %1123 = vmatpush2.msra.mxu0 0.0
        %1124 = vmatprep.mubr.f32.mxu0 0.0
        %1125 = vmatmul.mubr.f32.gmra.mxu0 %v1058
        %v1126 = vpop.f32.mrf.mxu0
        %v1127 = vadd.f32 0.0, %v1126
        %v1128 = vpop.f32.mrf.mxu0
        %1129 = vdwg.mxu0
        %v1131 = vsel %vm624, %v901, 0
        %1133 = vmatprep.subr.mxu0 0.0
        %1134 = vmatpush1.msra.mxu0 0.0
        %1135 = vmatprep.subr.mxu0 0.0
        %1136 = vmatpush1.msra.mxu0 0.0
        %1137 = vmatprep.subr.mxu0 0.0
        %1138 = vmatpush1.msra.mxu0 0.0
        %1139 = vmatprep.subr.mxu0 0.0
        %1140 = vmatpush1.msra.mxu0 0.0
        %1141 = vmatprep.subr.mxu0 0.0
        %1142 = vmatpush1.msra.mxu0 0.0
        %1143 = vmatprep.subr.mxu0 0.0
        %1144 = vmatpush1.msra.mxu0 0.0
        %1145 = vmatprep.subr.mxu0 0.0
        %1146 = vmatpush1.msra.mxu0 0.0
        %1147 = vmatprep.subr.mxu0 0.0
        %1148 = vmatpush1.msra.mxu0 0.0
        %1149 = vmatprep.subr.mxu0 0.0
        %1150 = vmatpush1.msra.mxu0 0.0
        %1151 = vmatprep.subr.mxu0 0.0
        %1152 = vmatpush1.msra.mxu0 0.0
        %1153 = vmatprep.subr.mxu0 0.0
        %1154 = vmatpush1.msra.mxu0 0.0
        %1155 = vmatprep.subr.mxu0 0.0
        %1156 = vmatpush1.msra.mxu0 0.0
        %1157 = vmatprep.subr.mxu0 0.0
        %1158 = vmatpush1.msra.mxu0 0.0
        %1159 = vmatprep.subr.mxu0 0.0
        %1160 = vmatpush1.msra.mxu0 0.0
        %1161 = vmatprep.subr.mxu0 0.0
        %1162 = vmatpush1.msra.mxu0 0.0
        %1163 = vmatprep.subr.mxu0 0.0
        %1164 = vmatpush1.msra.mxu0 %v982
        %1165 = vmatprep.subr.mxu0 0.0
        %1166 = vmatpush2.msra.mxu0 0.0
        %1167 = vmatprep.subr.mxu0 0.0
        %1168 = vmatpush2.msra.mxu0 0.0
        %1169 = vmatprep.subr.mxu0 0.0
        %1170 = vmatpush2.msra.mxu0 0.0
        %1171 = vmatprep.subr.mxu0 0.0
        %1172 = vmatpush2.msra.mxu0 0.0
        %1173 = vmatprep.subr.mxu0 0.0
        %1174 = vmatpush2.msra.mxu0 0.0
        %1175 = vmatprep.subr.mxu0 0.0
        %1176 = vmatpush2.msra.mxu0 0.0
        %1177 = vmatprep.subr.mxu0 0.0
        %1178 = vmatpush2.msra.mxu0 0.0
        %1179 = vmatprep.subr.mxu0 0.0
        %1180 = vmatpush2.msra.mxu0 0.0
        %1181 = vmatprep.subr.mxu0 0.0
        %1182 = vmatpush2.msra.mxu0 0.0
        %1183 = vmatprep.subr.mxu0 0.0
        %1184 = vmatpush2.msra.mxu0 0.0
        %1185 = vmatprep.subr.mxu0 0.0
        %1186 = vmatpush2.msra.mxu0 0.0
        %1187 = vmatprep.subr.mxu0 0.0
        %1188 = vmatpush2.msra.mxu0 0.0
        %1189 = vmatprep.subr.mxu0 0.0
        %1190 = vmatpush2.msra.mxu0 0.0
        %1191 = vmatprep.subr.mxu0 0.0
        %1192 = vmatpush2.msra.mxu0 0.0
        %1193 = vmatprep.subr.mxu0 0.0
        %1194 = vmatpush2.msra.mxu0 0.0
        %1195 = vmatprep.subr.mxu0 0.0
        %1196 = vmatpush2.msra.mxu0 0.0
        %1197 = vmatprep.mubr.f32.mxu0 0.0
        %1198 = vmatmul.mubr.f32.gmra.mxu0 %v1131
        %v1199 = vpop.f32.mrf.mxu0
        %v1200 = vadd.f32 0.0, %v1199
        %v1201 = vpop.f32.mrf.mxu0
        %1202 = vdwg.mxu0
        %v1204 = vsel %vm624, %v977, 0
        %1206 = vmatprep.subr.mxu0 0.0
        %1207 = vmatpush1.msra.mxu0 0.0
        %1208 = vmatprep.subr.mxu0 0.0
        %1209 = vmatpush1.msra.mxu0 0.0
        %1210 = vmatprep.subr.mxu0 0.0
        %1211 = vmatpush1.msra.mxu0 0.0
        %1212 = vmatprep.subr.mxu0 0.0
        %1213 = vmatpush1.msra.mxu0 0.0
        %1214 = vmatprep.subr.mxu0 0.0
        %1215 = vmatpush1.msra.mxu0 0.0
        %1216 = vmatprep.subr.mxu0 0.0
        %1217 = vmatpush1.msra.mxu0 0.0
        %1218 = vmatprep.subr.mxu0 0.0
        %1219 = vmatpush1.msra.mxu0 0.0
        %1220 = vmatprep.subr.mxu0 0.0
        %1221 = vmatpush1.msra.mxu0 0.0
        %1222 = vmatprep.subr.mxu0 0.0
        %1223 = vmatpush1.msra.mxu0 0.0
        %1224 = vmatprep.subr.mxu0 0.0
        %1225 = vmatpush1.msra.mxu0 0.0
        %1226 = vmatprep.subr.mxu0 0.0
        %1227 = vmatpush1.msra.mxu0 0.0
        %1228 = vmatprep.subr.mxu0 0.0
        %1229 = vmatpush1.msra.mxu0 0.0
        %1230 = vmatprep.subr.mxu0 0.0
        %1231 = vmatpush1.msra.mxu0 0.0
        %1232 = vmatprep.subr.mxu0 0.0
        %1233 = vmatpush1.msra.mxu0 0.0
        %1234 = vmatprep.subr.mxu0 0.0
        %1235 = vmatpush1.msra.mxu0 0.0
        %1236 = vmatprep.subr.mxu0 0.0
        %1237 = vmatpush1.msra.mxu0 %v983
        %1238 = vmatprep.subr.mxu0 0.0
        %1239 = vmatpush2.msra.mxu0 0.0
        %1240 = vmatprep.subr.mxu0 0.0
        %1241 = vmatpush2.msra.mxu0 0.0
        %1242 = vmatprep.subr.mxu0 0.0
        %1243 = vmatpush2.msra.mxu0 0.0
        %1244 = vmatprep.subr.mxu0 0.0
        %1245 = vmatpush2.msra.mxu0 0.0
        %1246 = vmatprep.subr.mxu0 0.0
        %1247 = vmatpush2.msra.mxu0 0.0
        %1248 = vmatprep.subr.mxu0 0.0
        %1249 = vmatpush2.msra.mxu0 0.0
        %1250 = vmatprep.subr.mxu0 0.0
        %1251 = vmatpush2.msra.mxu0 0.0
        %1252 = vmatprep.subr.mxu0 0.0
        %1253 = vmatpush2.msra.mxu0 0.0
        %1254 = vmatprep.subr.mxu0 0.0
        %1255 = vmatpush2.msra.mxu0 0.0
        %1256 = vmatprep.subr.mxu0 0.0
        %1257 = vmatpush2.msra.mxu0 0.0
        %1258 = vmatprep.subr.mxu0 0.0
        %1259 = vmatpush2.msra.mxu0 0.0
        %1260 = vmatprep.subr.mxu0 0.0
        %1261 = vmatpush2.msra.mxu0 0.0
        %1262 = vmatprep.subr.mxu0 0.0
        %1263 = vmatpush2.msra.mxu0 0.0
        %1264 = vmatprep.subr.mxu0 0.0
        %1265 = vmatpush2.msra.mxu0 0.0
        %1266 = vmatprep.subr.mxu0 0.0
        %1267 = vmatpush2.msra.mxu0 0.0
        %1268 = vmatprep.subr.mxu0 0.0
        %1269 = vmatpush2.msra.mxu0 0.0
        %1270 = vmatprep.mubr.f32.mxu0 0.0
        %1271 = vmatmul.mubr.f32.gmra.mxu0 %v1204
        %v1272 = vpop.f32.mrf.mxu0
        %v1273 = vadd.f32 0.0, %v1272
        %v1274 = vpop.f32.mrf.mxu0
        %1275 = vdwg.mxu0
        %v1276 = vsel %vm268, %v1054, 0.0
        %v1277 = vsel %vm268, %v1127, 0.0
        %v1278 = vadd.f32 %v1276, %v1277
        %v1279 = vsel %vm268, %v1200, 0.0
        %v1280 = vadd.f32 %v1278, %v1279
        %v1281 = vsel %vm268, %v1273, 0.0
        %v1282 = vadd.f32 %v1280, %v1281
        %v1283 = vlaneseq
        %v1284 = vshrl.u32 %v1283, 7
        %v1285 = vsub.s32 0, %v1284
        %v1286 = vrot.slane %v261, %v1285
        %v1287 = vadd.f32 %v1282, %v1286
        %v1288 = vadd.f32 %v257, %v1287
        %v1289 = vsel %vm268, %v1288, 0.0
        %1290 = vadd.xlane.f32.xlu0 %v1289
        %v1291 = vpop.xlane.xlu0 %1290
        %v1292 = vrcp.pop 32.0
        %v1293 = vmul.f32 %v1291, %v1292
        %v1294 = vsub.f32 %v1288, %v1293
        %v1295 = vmul.f32 %v1294, %v1294
        %v1296 = vsel %vm268, %v1295, 0.0
        %1297 = vadd.xlane.f32.xlu0 %v1296
        %v1298 = vpop.xlane.xlu0 %1297
        %v1299 = vmul.f32 %v1298, %v1292
        %v1300 = vadd.f32 %v1299, 1e-05
        %v1301 = vrsqrt.pop %v1300
        %v1302 = vmul.f32 %v1294, %v1301
        %v1303 = vlaneseq
        %v1304 = vshrl.u32 %v1303, 7
        %v1305 = vsub.s32 0, %v1304
        %v1306 = vrot.slane %v262, %v1305
        %v1307 = vmul.f32 %v1302, %v1306
        %v1308 = vlaneseq
        %v1309 = vshrl.u32 %v1308, 7
        %v1310 = vsub.s32 0, %v1309
        %v1311 = vrot.slane %v263, %v1310
        %v1312 = vadd.f32 %v1307, %v1311
        %1313 = vst.msk [vmem:[%s256] sm:$0xff] %vm268, %v1312
        %s1314 = sand.u32 %s120, 1
        %s1315 = scalar_lea.sflag [#allocation4], %s1314
        %s1316 = sand.u32 %s120, 1
        %s1317 = smul.addr %s1316, 8
        %s1318 = scalar_lea.vmem [#allocation10], %s1317
        // Predicated region
        $region53: #{tpu_custom_call.1} parent=35 // pred_check
          %p1319 = pneg %p130
        $region54: #{tpu_custom_call.1} parent=35 // pred_check_branch
          %1321 = sbr.rel (%p1319) target = $region56
        $region55: #{tpu_custom_call.1} parent=35 // pred_region
          %s1323 = ssub.s32 128, 128
          %1324 = vsyncadd %s1315, %s1323
          %s1325 = smul.addr %s23, 128
          %s1326 = scalar_lea.hbm %s4, %s1325
          %s1328 = sshll.u32 %s1318, 4
          %s1329 = int_to_ptr.vmem [resolvable:$true] %s1328
          %1331 = dma.vmem_to_hbm [thread:$0]  %s1329, 128, %s1326, %s1315
        $region56: #{tpu_custom_call.1} parent=35 // pred_fallthru
          _
      $region36: #{tpu_custom_call.1} parent=5 // pred_fallthru
        _
      %p1332 = scmp.le.s32.totalorder 2, %s18
      // Predicated region
      $region57: #{tpu_custom_call.1} parent=5 // pred_check
        %p1333 = pneg %p1332
      $region58: #{tpu_custom_call.1} parent=5 // pred_check_branch
        %1335 = sbr.rel (%p1333) target = $region60
      $region59: #{tpu_custom_call.1} parent=5 // pred_region
        %s1336 = ssub.s32 %s18, 2
        // Predicated region
        $region61: #{tpu_custom_call.1} parent=59 // pred_check
          %p1337 = pneg %p136
        $region62: #{tpu_custom_call.1} parent=59 // pred_check_branch
          %1339 = sbr.rel (%p1337) target = $region64
        $region63: #{tpu_custom_call.1} parent=59 // pred_region
          %s1340 = sand.u32 %s121, 1
          %s1341 = scalar_lea.sflag [#allocation4], %s1340
          %s1342 = sand.u32 %s121, 1
          %s1343 = smul.addr %s1342, 8
          %s1344 = scalar_lea.vmem [#allocation10], %s1343
          %1345 = dma.done %s1341, 128
        $region64: #{tpu_custom_call.1} parent=59 // pred_fallthru
          _
      $region60: #{tpu_custom_call.1} parent=5 // pred_fallthru
        _
    $region6: #{tpu_custom_call.1} parent=1 // loop_footer
      %s22 = sadd.s32 1, %s18
    $region7: #{tpu_custom_call.1} parent=1 // loop_footer_branch
      %17 = sbr.rel target = $region3
    $region8: #{tpu_custom_call.1} parent=1 // loop_exit
      _
    %1346 = vsyncpa [#allocation3], 1
    %s1347 = scalar_lea.sflag [#allocation3], 1
    %1348 = vsyncpa %s1347, 1
    %1349 = vsyncpa [#allocation6], 1
    %1350 = vsyncpa [#allocation9], 1
    %1351 = vsyncpa [#allocation4], 1
    %s1352 = scalar_lea.sflag [#allocation4], 1
    %1353 = vsyncpa %s1352, 1

</llo_original>
